<compile_context>
chip_gen: v6e
topology: v6e:2x2x1
jax: 0.10.0
libtpu: 0.0.40
codegen_flags: <defaults>
</compile_context>

<pallas_src>
import math

import jax
import jax.numpy as jnp
from jax import lax
from jax.experimental import pallas as pl
from jax.experimental.pallas import tpu as pltpu

# ----------------------------- model dims -----------------------------------
H = 32        # hidden size
FF = 64       # feed-forward size
L = 8         # sequence length
VOCAB = 64    # vocabulary size
N_SENSE = 5   # number of candidate senses per word
EPS = 1e-5


# --------------------------- fused kernel ------------------------------------
def _layernorm(x, gamma, beta):
    mu = jnp.mean(x, axis=-1, keepdims=True)
    var = jnp.mean((x - mu) ** 2, axis=-1, keepdims=True)
    return (x - mu) * lax.rsqrt(var + EPS) * gamma + beta


def _make_fused_kernel(B, S):
    """Fused forward: encode B sentences + B*S glosses, score, cross-entropy."""
    N = B + B * S          # total number of sequences
    NL = N * L

    def kernel(xf_ref, xc_ref, amask_ref, wkvqo_ref, wffn_ref, vecs_ref,
               labels_ref, logits_ref, loss_ref):
        xf = xf_ref[...]                       # (N*L, H) all token embeddings
        xc = xc_ref[...]                       # (N, H)   CLS-token embeddings
        amask = amask_ref[...]                 # (N, N*L) block-diag * key-padding

        wkvqo = wkvqo_ref[...]                 # (H, 4H) = [wk | wv | wq | wo]
        wffn = wffn_ref[...]                   # (H+FF, FF): [:H]=w1, [H:, :H]=w2
        vecs = vecs_ref[...]                   # (8, 128) packed biases / LN params

        w_kv = wkvqo[:, 0:2 * H]
        wq = wkvqo[:, 2 * H:3 * H]
        wo = wkvqo[:, 3 * H:4 * H]
        w1 = wffn[0:H, :]
        w2 = wffn[H:H + FF, 0:H]
        bf1 = vecs[0:1, 0:FF]
        bf2 = vecs[1:2, 0:H]
        g1 = vecs[2:3, 0:H]
        be1 = vecs[3:4, 0:H]
        g2 = vecs[4:5, 0:H]
        be2 = vecs[5:6, 0:H]

        # ---- batched single-layer encoder, CLS-query only ----
        kv = jnp.dot(xf, w_kv, preferred_element_type=jnp.float32)      # (N*L, 2H)
        k = kv[:, 0:H]
        v = kv[:, H:2 * H]
        q = jnp.dot(xc, wq, preferred_element_type=jnp.float32)         # (N, H)

        # scores[n, j] = <q_n, k_j> ; mask keeps only keys of sequence n
        scores = lax.dot_general(
            q, k, (((1,), (1,)), ((), ())),
            preferred_element_type=jnp.float32) * (1.0 / math.sqrt(H))  # (N, N*L)
        scores = scores + (amask - 1.0) * 1e9
        smax = jnp.max(scores, axis=-1, keepdims=True)
        p = jnp.exp(scores - smax)
        p = p / jnp.sum(p, axis=-1, keepdims=True)                       # (N, N*L)

        attn = jnp.dot(p, v, preferred_element_type=jnp.float32)        # (N, H)
        attn = jnp.dot(attn, wo, preferred_element_type=jnp.float32)    # (N, H)

        h1 = _layernorm(xc + attn, g1, be1)                              # (N, H)
        ff = jnp.dot(h1, w1, preferred_element_type=jnp.float32) + bf1   # (N, FF)
        ff = jnp.maximum(ff, 0.0)
        ff = jnp.dot(ff, w2, preferred_element_type=jnp.float32) + bf2   # (N, H)
        cls = _layernorm(h1 + ff, g2, be2)                               # (N, H)

        # ---- bi-encoder scoring: einsum('bsh,bsh->bs') ----
        rows = []
        for b in range(B):                                   # B is tiny and static
            ctx_b = cls[b:b + 1, :]                          # (1, H) sentence CLS
            gls_b = cls[B + b * S:B + (b + 1) * S, :]        # (S, H) gloss CLS
            rows.append(lax.dot_general(
                ctx_b, gls_b, (((1,), (1,)), ((), ())),
                preferred_element_type=jnp.float32))         # (1, S)
        logits = jnp.concatenate(rows, axis=0)               # (B, S)
        logits_ref[...] = logits

        # ---- cross-entropy over the S senses ----
        labels = labels_ref[...]                             # (B, 1) int32
        m = jnp.max(logits, axis=-1, keepdims=True)
        lse = m + jnp.log(jnp.sum(jnp.exp(logits - m), axis=-1, keepdims=True))
        idx = lax.broadcasted_iota(jnp.int32, (B, S), 1)
        picked = jnp.sum(jnp.where(idx == labels, logits, 0.0),
                         axis=-1, keepdims=True)              # (B, 1)
        loss_ref[...] = jnp.mean(lse - picked, axis=0, keepdims=True)   # (1, 1)

    return kernel


# --------------------------- parameter packing --------------------------------
def _pack_params(params):
    w_kvqo = jnp.concatenate(
        [params["wk"], params["wv"], params["wq"], params["wo"]], axis=1)  # (H, 4H)
    w2_pad = jnp.zeros((FF, FF), jnp.float32).at[:, :H].set(params["w2"])
    w_ffn = jnp.concatenate([params["w1"], w2_pad], axis=0)                # (H+FF, FF)
    vecs = jnp.zeros((8, 128), jnp.float32)
    vecs = vecs.at[0, :FF].set(params["bf1"].reshape(FF))
    vecs = vecs.at[1, :H].set(params["bf2"].reshape(H))
    vecs = vecs.at[2, :H].set(params["g1"].reshape(H))
    vecs = vecs.at[3, :H].set(params["be1"].reshape(H))
    vecs = vecs.at[4, :H].set(params["g2"].reshape(H))
    vecs = vecs.at[5, :H].set(params["be2"].reshape(H))
    return w_kvqo, w_ffn, vecs


# ------------------------------ forward --------------------------------------
def wsd_forward(params, sentence_inputs, sentence_mask,
                gloss_inputs, gloss_mask, target_word, labels=None):
    """Mirrors WordSenseDisambiguationModel.forward.  target_word is unused
    (it is unused in the reference forward as well)."""
    del target_word
    b, s, lg = gloss_inputs.shape
    n = b + b * s
    nl = n * L

    # Concatenate sentence + gloss sequences -> one encoder batch (glue).
    ids = jnp.concatenate(
        [sentence_inputs, gloss_inputs.reshape(b * s, lg)], axis=0)        # (N, L)
    mask = jnp.concatenate(
        [sentence_mask, gloss_mask.reshape(b * s, lg)], axis=0)            # (N, L)
    mask = mask.astype(jnp.float32)

    emb = params["emb"]
    x_flat = emb[ids].astype(jnp.float32).reshape(nl, H)                   # (N*L, H)
    x_cls = emb[ids[:, 0]].astype(jnp.float32)                             # (N, H)

    # Block-diagonal key mask: key j belongs to sequence j // L, and padding.
    seq_of_key = jnp.arange(nl, dtype=jnp.int32) // L
    blockdiag = (seq_of_key[None, :] ==
                 jnp.arange(n, dtype=jnp.int32)[:, None]).astype(jnp.float32)
    attn_mask = blockdiag * mask.reshape(1, nl)                            # (N, N*L)

    w_kvqo, w_ffn, vecs = _pack_params(params)

    have_labels = labels is not None
    lab = (labels if have_labels
           else jnp.zeros((b,), jnp.int32)).reshape(b, 1).astype(jnp.int32)

    kernel = _make_fused_kernel(b, s)
    logits, loss = pl.pallas_call(
        kernel,
        out_shape=(jax.ShapeDtypeStruct((b, s), jnp.float32),
                   jax.ShapeDtypeStruct((1, 1), jnp.float32)),
        grid=(1,),
        in_specs=[
            pl.BlockSpec((nl, H), lambda i: (0, 0)),        # x_flat
            pl.BlockSpec((n, H), lambda i: (0, 0)),         # x_cls
            pl.BlockSpec((n, nl), lambda i: (0, 0)),        # attn_mask
            pl.BlockSpec((H, 4 * H), lambda i: (0, 0)),     # packed wk|wv|wq|wo
            pl.BlockSpec((H + FF, FF), lambda i: (0, 0)),   # packed w1 / w2
            pl.BlockSpec((8, 128), lambda i: (0, 0)),       # packed biases / LN
            pl.BlockSpec((b, 1), lambda i: (0, 0)),         # labels
        ],
        out_specs=(pl.BlockSpec((b, s), lambda i: (0, 0)),
                   pl.BlockSpec((1, 1), lambda i: (0, 0))),
        compiler_params=pltpu.CompilerParams(
            dimension_semantics=("arbitrary",)),
    )(x_flat, x_cls, attn_mask, w_kvqo, w_ffn, vecs, lab)

    if not have_labels:
        return None, logits
    return loss[0, 0], logits


# --------------------------- parameter init ----------------------------------
def init_params(key):
    ks = jax.random.split(key, 8)
    scale = 0.05
    return {
        "emb": jax.random.normal(ks[0], (VOCAB, H), jnp.float32) * scale,
        "wq": jax.random.normal(ks[1], (H, H), jnp.float32) * scale,
        "wk": jax.random.normal(ks[2], (H, H), jnp.float32) * scale,
        "wv": jax.random.normal(ks[3], (H, H), jnp.float32) * scale,
        "wo": jax.random.normal(ks[4], (H, H), jnp.float32) * scale,
        "w1": jax.random.normal(ks[5], (H, FF), jnp.float32) * scale,
        "bf1": jnp.zeros((1, FF), jnp.float32),
        "w2": jax.random.normal(ks[6], (FF, H), jnp.float32) * scale,
        "bf2": jnp.zeros((1, H), jnp.float32),
        "g1": jnp.ones((1, H), jnp.float32),
        "be1": jnp.zeros((1, H), jnp.float32),
        "g2": jnp.ones((1, H), jnp.float32),
        "be2": jnp.zeros((1, H), jnp.float32),
    }


# --------------------------------- main ---------------------------------------
if __name__ == "__main__":
    key = jax.random.PRNGKey(0)
    k1, k2, k3, k4 = jax.random.split(key, 4)
    B = 2

    sentence_inputs = jax.random.randint(k1, (B, L), 0, VOCAB, dtype=jnp.int32)
    sentence_mask = jnp.ones((B, L), jnp.float32).at[:, 6:].set(0.0)

    gloss_inputs = jax.random.randint(k2, (B, N_SENSE, L), 0, VOCAB, dtype=jnp.int32)
    gloss_mask = jnp.ones((B, N_SENSE, L), jnp.float32).at[:, :, 7:].set(0.0)

    target_word = jax.random.randint(k3, (B,), 0, L, dtype=jnp.int32)   # unused in forward
    labels = jax.random.randint(k4, (B,), 0, N_SENSE, dtype=jnp.int32)

    params = init_params(jax.random.PRNGKey(42))

    loss, logits = jax.jit(wsd_forward)(
        params, sentence_inputs, sentence_mask,
        gloss_inputs, gloss_mask, target_word, labels)
    jax.block_until_ready((loss, logits))

    assert logits.shape == (B, N_SENSE)
    assert loss.shape == ()
    print("KERNEL_OK")
</pallas_src>

<mosaic_0001>
module attributes {stable_mosaic.version = 11 : i64} {
  func.func @kernel(%arg0: i32, %arg1: memref<96x32xf32, #tpu.memory_space<vmem>>, %arg2: memref<12x32xf32, #tpu.memory_space<vmem>>, %arg3: memref<12x96xf32, #tpu.memory_space<vmem>>, %arg4: memref<32x128xf32, #tpu.memory_space<vmem>>, %arg5: memref<96x64xf32, #tpu.memory_space<vmem>>, %arg6: memref<8x128xf32, #tpu.memory_space<vmem>>, %arg7: memref<2x1xi32, #tpu.memory_space<vmem>>, %arg8: memref<2x5xf32, #tpu.memory_space<vmem>>, %arg9: memref<1x1xf32, #tpu.memory_space<vmem>>) attributes {dimension_semantics = [#tpu.dimension_semantics<arbitrary>], iteration_bounds = array<i64: 1>, scalar_prefetch = 0 : i64, scratch_operands = 0 : i64, tpu.core_type = #tpu.core_type<tc>, window_params = [{pipeline_mode = #tpu.pipeline_mode<synchronous>, transform_indices = @transform_0, window_bounds = array<i64: 96, 32>}, {pipeline_mode = #tpu.pipeline_mode<synchronous>, transform_indices = @transform_1, window_bounds = array<i64: 12, 32>}, {pipeline_mode = #tpu.pipeline_mode<synchronous>, transform_indices = @transform_2, window_bounds = array<i64: 12, 96>}, {pipeline_mode = #tpu.pipeline_mode<synchronous>, transform_indices = @transform_3, window_bounds = array<i64: 32, 128>}, {pipeline_mode = #tpu.pipeline_mode<synchronous>, transform_indices = @transform_4, window_bounds = array<i64: 96, 64>}, {pipeline_mode = #tpu.pipeline_mode<synchronous>, transform_indices = @transform_5, window_bounds = array<i64: 8, 128>}, {pipeline_mode = #tpu.pipeline_mode<synchronous>, transform_indices = @transform_6, window_bounds = array<i64: 2, 1>}, {pipeline_mode = #tpu.pipeline_mode<synchronous>, transform_indices = @transform_7, window_bounds = array<i64: 2, 5>}, {pipeline_mode = #tpu.pipeline_mode<synchronous>, transform_indices = @transform_8, window_bounds = array<i64: 1, 1>}]} {
    %c0 = arith.constant 0 : index
    %c0_0 = arith.constant 0 : index
    %0 = vector.load %arg1[%c0, %c0_0] : memref<96x32xf32, #tpu.memory_space<vmem>>, vector<96x32xf32>
    %c0_1 = arith.constant 0 : index
    %c0_2 = arith.constant 0 : index
    %1 = vector.load %arg2[%c0_1, %c0_2] : memref<12x32xf32, #tpu.memory_space<vmem>>, vector<12x32xf32>
    %c0_3 = arith.constant 0 : index
    %c0_4 = arith.constant 0 : index
    %2 = vector.load %arg3[%c0_3, %c0_4] : memref<12x96xf32, #tpu.memory_space<vmem>>, vector<12x96xf32>
    %c0_5 = arith.constant 0 : index
    %c0_6 = arith.constant 0 : index
    %3 = vector.load %arg4[%c0_5, %c0_6] : memref<32x128xf32, #tpu.memory_space<vmem>>, vector<32x128xf32>
    %c0_7 = arith.constant 0 : index
    %c0_8 = arith.constant 0 : index
    %4 = vector.load %arg5[%c0_7, %c0_8] : memref<96x64xf32, #tpu.memory_space<vmem>>, vector<96x64xf32>
    %c0_9 = arith.constant 0 : index
    %c0_10 = arith.constant 0 : index
    %5 = vector.load %arg6[%c0_9, %c0_10] : memref<8x128xf32, #tpu.memory_space<vmem>>, vector<8x128xf32>
    %6 = vector.extract_strided_slice %3 {offsets = [0, 0], sizes = [32, 64], strides = [1, 1]} : vector<32x128xf32> to vector<32x64xf32>
    %7 = vector.extract_strided_slice %3 {offsets = [0, 64], sizes = [32, 32], strides = [1, 1]} : vector<32x128xf32> to vector<32x32xf32>
    %8 = vector.extract_strided_slice %3 {offsets = [0, 96], sizes = [32, 32], strides = [1, 1]} : vector<32x128xf32> to vector<32x32xf32>
    %9 = vector.extract_strided_slice %4 {offsets = [0, 0], sizes = [32, 64], strides = [1, 1]} : vector<96x64xf32> to vector<32x64xf32>
    %10 = vector.extract_strided_slice %4 {offsets = [32, 0], sizes = [64, 32], strides = [1, 1]} : vector<96x64xf32> to vector<64x32xf32>
    %11 = vector.extract_strided_slice %5 {offsets = [0, 0], sizes = [1, 64], strides = [1, 1]} : vector<8x128xf32> to vector<1x64xf32>
    %12 = vector.extract_strided_slice %5 {offsets = [1, 0], sizes = [1, 32], strides = [1, 1]} : vector<8x128xf32> to vector<1x32xf32>
    %13 = vector.extract_strided_slice %5 {offsets = [2, 0], sizes = [1, 32], strides = [1, 1]} : vector<8x128xf32> to vector<1x32xf32>
    %14 = vector.extract_strided_slice %5 {offsets = [3, 0], sizes = [1, 32], strides = [1, 1]} : vector<8x128xf32> to vector<1x32xf32>
    %15 = vector.extract_strided_slice %5 {offsets = [4, 0], sizes = [1, 32], strides = [1, 1]} : vector<8x128xf32> to vector<1x32xf32>
    %16 = vector.extract_strided_slice %5 {offsets = [5, 0], sizes = [1, 32], strides = [1, 1]} : vector<8x128xf32> to vector<1x32xf32>
    %cst = arith.constant dense<0.000000e+00> : vector<96x64xf32>
    %17 = tpu.matmul %0, %6, %cst {dimension_numbers = #tpu.dot_dimension_numbers<[1], [0], [0], [1], [0, 0, 1, 1], [], []>} : vector<96x32xf32>, vector<32x64xf32>, vector<96x64xf32> -> vector<96x64xf32>
    %18 = vector.extract_strided_slice %17 {offsets = [0, 0], sizes = [96, 32], strides = [1, 1]} : vector<96x64xf32> to vector<96x32xf32>
    %19 = vector.extract_strided_slice %17 {offsets = [0, 32], sizes = [96, 32], strides = [1, 1]} : vector<96x64xf32> to vector<96x32xf32>
    %cst_11 = arith.constant dense<0.000000e+00> : vector<12x32xf32>
    %20 = tpu.matmul %1, %7, %cst_11 {dimension_numbers = #tpu.dot_dimension_numbers<[1], [0], [0], [1], [0, 0, 1, 1], [], []>} : vector<12x32xf32>, vector<32x32xf32>, vector<12x32xf32> -> vector<12x32xf32>
    %cst_12 = arith.constant dense<0.000000e+00> : vector<12x96xf32>
    %21 = tpu.matmul %20, %18, %cst_12 {dimension_numbers = #tpu.dot_dimension_numbers<[1], [1], [0], [0], [0, 0, 1, 0], [], []>} : vector<12x32xf32>, vector<96x32xf32>, vector<12x96xf32> -> vector<12x96xf32>
    %cst_13 = arith.constant 0.176776692 : f32
    %22 = vector.broadcast %cst_13 : f32 to vector<12x96xf32>
    %23 = arith.mulf %21, %22 : vector<12x96xf32>
    %cst_14 = arith.constant 1.000000e+00 : f32
    %24 = vector.broadcast %cst_14 : f32 to vector<12x96xf32>
    %25 = arith.subf %2, %24 : vector<12x96xf32>
    %cst_15 = arith.constant 1.000000e+09 : f32
    %26 = vector.broadcast %cst_15 : f32 to vector<12x96xf32>
    %27 = arith.mulf %25, %26 : vector<12x96xf32>
    %28 = arith.addf %23, %27 : vector<12x96xf32>
    %cst_16 = arith.constant dense<0xFF800000> : vector<12xf32>
    %29 = vector.multi_reduction <maximumf>, %28, %cst_16 [1] : vector<12x96xf32> to vector<12xf32>
    %30 = vector.shape_cast %29 : vector<12xf32> to vector<12x1xf32>
    %31 = vector.broadcast %30 : vector<12x1xf32> to vector<12x96xf32>
    %32 = arith.subf %28, %31 : vector<12x96xf32>
    %33 = math.exp %32 : vector<12x96xf32>
    %cst_17 = arith.constant dense<0.000000e+00> : vector<12xf32>
    %34 = vector.multi_reduction <add>, %33, %cst_17 [1] : vector<12x96xf32> to vector<12xf32>
    %35 = vector.shape_cast %34 : vector<12xf32> to vector<12x1xf32>
    %36 = vector.broadcast %35 : vector<12x1xf32> to vector<12x96xf32>
    %37 = arith.divf %33, %36 : vector<12x96xf32>
    %cst_18 = arith.constant dense<0.000000e+00> : vector<12x32xf32>
    %38 = tpu.matmul %37, %19, %cst_18 {dimension_numbers = #tpu.dot_dimension_numbers<[1], [0], [0], [1], [0, 0, 1, 1], [], []>} : vector<12x96xf32>, vector<96x32xf32>, vector<12x32xf32> -> vector<12x32xf32>
    %cst_19 = arith.constant dense<0.000000e+00> : vector<12x32xf32>
    %39 = tpu.matmul %38, %8, %cst_19 {dimension_numbers = #tpu.dot_dimension_numbers<[1], [0], [0], [1], [0, 0, 1, 1], [], []>} : vector<12x32xf32>, vector<32x32xf32>, vector<12x32xf32> -> vector<12x32xf32>
    %40 = arith.addf %1, %39 : vector<12x32xf32>
    %cst_20 = arith.constant dense<0.000000e+00> : vector<12xf32>
    %41 = vector.multi_reduction <add>, %40, %cst_20 [1] : vector<12x32xf32> to vector<12xf32>
    %42 = vector.shape_cast %41 : vector<12xf32> to vector<12x1xf32>
    %cst_21 = arith.constant 3.200000e+01 : f32
    %43 = vector.broadcast %cst_21 : f32 to vector<12x1xf32>
    %44 = arith.divf %42, %43 : vector<12x1xf32>
    %45 = vector.broadcast %44 : vector<12x1xf32> to vector<12x32xf32>
    %46 = arith.subf %40, %45 : vector<12x32xf32>
    %47 = arith.mulf %46, %46 : vector<12x32xf32>
    %cst_22 = arith.constant dense<0.000000e+00> : vector<12xf32>
    %48 = vector.multi_reduction <add>, %47, %cst_22 [1] : vector<12x32xf32> to vector<12xf32>
    %49 = vector.shape_cast %48 : vector<12xf32> to vector<12x1xf32>
    %cst_23 = arith.constant 3.200000e+01 : f32
    %50 = vector.broadcast %cst_23 : f32 to vector<12x1xf32>
    %51 = arith.divf %49, %50 : vector<12x1xf32>
    %52 = vector.broadcast %44 : vector<12x1xf32> to vector<12x32xf32>
    %53 = arith.subf %40, %52 : vector<12x32xf32>
    %cst_24 = arith.constant 9.99999974E-6 : f32
    %54 = vector.broadcast %cst_24 : f32 to vector<12x1xf32>
    %55 = arith.addf %51, %54 : vector<12x1xf32>
    %56 = math.rsqrt %55 : vector<12x1xf32>
    %57 = vector.broadcast %56 : vector<12x1xf32> to vector<12x32xf32>
    %58 = arith.mulf %53, %57 : vector<12x32xf32>
    %59 = vector.broadcast %13 : vector<1x32xf32> to vector<12x32xf32>
    %60 = arith.mulf %58, %59 : vector<12x32xf32>
    %61 = vector.broadcast %14 : vector<1x32xf32> to vector<12x32xf32>
    %62 = arith.addf %60, %61 : vector<12x32xf32>
    %cst_25 = arith.constant dense<0.000000e+00> : vector<12x64xf32>
    %63 = tpu.matmul %62, %9, %cst_25 {dimension_numbers = #tpu.dot_dimension_numbers<[1], [0], [0], [1], [0, 0, 1, 1], [], []>} : vector<12x32xf32>, vector<32x64xf32>, vector<12x64xf32> -> vector<12x64xf32>
    %64 = vector.broadcast %11 : vector<1x64xf32> to vector<12x64xf32>
    %65 = arith.addf %63, %64 : vector<12x64xf32>
    %cst_26 = arith.constant 0.000000e+00 : f32
    %66 = vector.broadcast %cst_26 : f32 to vector<12x64xf32>
    %67 = arith.maximumf %65, %66 : vector<12x64xf32>
    %cst_27 = arith.constant dense<0.000000e+00> : vector<12x32xf32>
    %68 = tpu.matmul %67, %10, %cst_27 {dimension_numbers = #tpu.dot_dimension_numbers<[1], [0], [0], [1], [0, 0, 1, 1], [], []>} : vector<12x64xf32>, vector<64x32xf32>, vector<12x32xf32> -> vector<12x32xf32>
    %69 = vector.broadcast %12 : vector<1x32xf32> to vector<12x32xf32>
    %70 = arith.addf %68, %69 : vector<12x32xf32>
    %71 = arith.addf %62, %70 : vector<12x32xf32>
    %cst_28 = arith.constant dense<0.000000e+00> : vector<12xf32>
    %72 = vector.multi_reduction <add>, %71, %cst_28 [1] : vector<12x32xf32> to vector<12xf32>
    %73 = vector.shape_cast %72 : vector<12xf32> to vector<12x1xf32>
    %cst_29 = arith.constant 3.200000e+01 : f32
    %74 = vector.broadcast %cst_29 : f32 to vector<12x1xf32>
    %75 = arith.divf %73, %74 : vector<12x1xf32>
    %76 = vector.broadcast %75 : vector<12x1xf32> to vector<12x32xf32>
    %77 = arith.subf %71, %76 : vector<12x32xf32>
    %78 = arith.mulf %77, %77 : vector<12x32xf32>
    %cst_30 = arith.constant dense<0.000000e+00> : vector<12xf32>
    %79 = vector.multi_reduction <add>, %78, %cst_30 [1] : vector<12x32xf32> to vector<12xf32>
    %80 = vector.shape_cast %79 : vector<12xf32> to vector<12x1xf32>
    %cst_31 = arith.constant 3.200000e+01 : f32
    %81 = vector.broadcast %cst_31 : f32 to vector<12x1xf32>
    %82 = arith.divf %80, %81 : vector<12x1xf32>
    %83 = vector.broadcast %75 : vector<12x1xf32> to vector<12x32xf32>
    %84 = arith.subf %71, %83 : vector<12x32xf32>
    %cst_32 = arith.constant 9.99999974E-6 : f32
    %85 = vector.broadcast %cst_32 : f32 to vector<12x1xf32>
    %86 = arith.addf %82, %85 : vector<12x1xf32>
    %87 = math.rsqrt %86 : vector<12x1xf32>
    %88 = vector.broadcast %87 : vector<12x1xf32> to vector<12x32xf32>
    %89 = arith.mulf %84, %88 : vector<12x32xf32>
    %90 = vector.broadcast %15 : vector<1x32xf32> to vector<12x32xf32>
    %91 = arith.mulf %89, %90 : vector<12x32xf32>
    %92 = vector.broadcast %16 : vector<1x32xf32> to vector<12x32xf32>
    %93 = arith.addf %91, %92 : vector<12x32xf32>
    %94 = vector.extract_strided_slice %93 {offsets = [0, 0], sizes = [1, 32], strides = [1, 1]} : vector<12x32xf32> to vector<1x32xf32>
    %95 = vector.extract_strided_slice %93 {offsets = [2, 0], sizes = [5, 32], strides = [1, 1]} : vector<12x32xf32> to vector<5x32xf32>
    %cst_33 = arith.constant dense<0.000000e+00> : vector<1x5xf32>
    %96 = tpu.matmul %94, %95, %cst_33 {dimension_numbers = #tpu.dot_dimension_numbers<[1], [1], [0], [0], [0, 0, 1, 0], [], []>} : vector<1x32xf32>, vector<5x32xf32>, vector<1x5xf32> -> vector<1x5xf32>
    %97 = vector.extract_strided_slice %93 {offsets = [1, 0], sizes = [1, 32], strides = [1, 1]} : vector<12x32xf32> to vector<1x32xf32>
    %98 = vector.extract_strided_slice %93 {offsets = [7, 0], sizes = [5, 32], strides = [1, 1]} : vector<12x32xf32> to vector<5x32xf32>
    %cst_34 = arith.constant dense<0.000000e+00> : vector<1x5xf32>
    %99 = tpu.matmul %97, %98, %cst_34 {dimension_numbers = #tpu.dot_dimension_numbers<[1], [1], [0], [0], [0, 0, 1, 0], [], []>} : vector<1x32xf32>, vector<5x32xf32>, vector<1x5xf32> -> vector<1x5xf32>
    %100 = tpu.concatenate %96, %99 in 0 : vector<1x5xf32>, vector<1x5xf32> -> vector<2x5xf32>
    %c0_35 = arith.constant 0 : index
    %c0_36 = arith.constant 0 : index
    %101 = vector.load %arg8[%c0_35, %c0_36] : memref<2x5xf32, #tpu.memory_space<vmem>>, vector<2x5xf32>
    tpu.vector_store %arg8[%c0_35, %c0_36], %100 {strides = array<i32>} : memref<2x5xf32, #tpu.memory_space<vmem>>, vector<2x5xf32>,
    %c0_37 = arith.constant 0 : index
    %c0_38 = arith.constant 0 : index
    %102 = vector.load %arg7[%c0_37, %c0_38] : memref<2x1xi32, #tpu.memory_space<vmem>>, vector<2x1xi32>
    %cst_39 = arith.constant dense<0xFF800000> : vector<2xf32>
    %103 = vector.multi_reduction <maximumf>, %100, %cst_39 [1] : vector<2x5xf32> to vector<2xf32>
    %104 = vector.shape_cast %103 : vector<2xf32> to vector<2x1xf32>
    %105 = vector.broadcast %104 : vector<2x1xf32> to vector<2x5xf32>
    %106 = arith.subf %100, %105 : vector<2x5xf32>
    %107 = math.exp %106 : vector<2x5xf32>
    %cst_40 = arith.constant dense<0.000000e+00> : vector<2xf32>
    %108 = vector.multi_reduction <add>, %107, %cst_40 [1] : vector<2x5xf32> to vector<2xf32>
    %109 = vector.shape_cast %108 : vector<2xf32> to vector<2x1xf32>
    %110 = math.log %109 : vector<2x1xf32>
    %111 = arith.addf %104, %110 : vector<2x1xf32>
    %112 = tpu.iota {dimensions = array<i32: 1>} : vector<2x5xi32>
    %113 = vector.broadcast %102 : vector<2x1xi32> to vector<2x5xi32>
    %114 = arith.cmpi eq, %112, %113 : vector<2x5xi32>
    %cst_41 = arith.constant 0.000000e+00 : f32
    %115 = vector.broadcast %cst_41 : f32 to vector<2x5xf32>
    %116 = arith.select %114, %100, %115 : vector<2x5xi1>, vector<2x5xf32>
    %cst_42 = arith.constant dense<0.000000e+00> : vector<2xf32>
    %117 = vector.multi_reduction <add>, %116, %cst_42 [1] : vector<2x5xf32> to vector<2xf32>
    %118 = vector.shape_cast %117 : vector<2xf32> to vector<2x1xf32>
    %119 = arith.subf %111, %118 : vector<2x1xf32>
    %cst_43 = arith.constant dense<0.000000e+00> : vector<1xf32>
    %120 = vector.multi_reduction <add>, %119, %cst_43 [0] : vector<2x1xf32> to vector<1xf32>
    %121 = vector.shape_cast %120 : vector<1xf32> to vector<1x1xf32>
    %cst_44 = arith.constant 2.000000e+00 : f32
    %122 = vector.broadcast %cst_44 : f32 to vector<1x1xf32>
    %123 = arith.divf %121, %122 : vector<1x1xf32>
    %c0_45 = arith.constant 0 : index
    %c0_46 = arith.constant 0 : index
    %124 = vector.load %arg9[%c0_45, %c0_46] : memref<1x1xf32, #tpu.memory_space<vmem>>, vector<1x1xf32>
    tpu.vector_store %arg9[%c0_45, %c0_46], %123 {strides = array<i32>} : memref<1x1xf32, #tpu.memory_space<vmem>>, vector<1x1xf32>,
    return
  }
  func.func @transform_0(%arg0: i32) -> (i32, i32) {
    %c0_i32 = arith.constant 0 : i32
    %c0_i32_0 = arith.constant 0 : i32
    %c0_i32_1 = arith.constant 0 : i32
    return %c0_i32, %c0_i32_0 : i32, i32
  }
  func.func @transform_1(%arg0: i32) -> (i32, i32) {
    %c0_i32 = arith.constant 0 : i32
    %c0_i32_0 = arith.constant 0 : i32
    %c0_i32_1 = arith.constant 0 : i32
    return %c0_i32, %c0_i32_0 : i32, i32
  }
  func.func @transform_2(%arg0: i32) -> (i32, i32) {
    %c0_i32 = arith.constant 0 : i32
    %c0_i32_0 = arith.constant 0 : i32
    %c0_i32_1 = arith.constant 0 : i32
    return %c0_i32, %c0_i32_0 : i32, i32
  }
  func.func @transform_3(%arg0: i32) -> (i32, i32) {
    %c0_i32 = arith.constant 0 : i32
    %c0_i32_0 = arith.constant 0 : i32
    %c0_i32_1 = arith.constant 0 : i32
    return %c0_i32, %c0_i32_0 : i32, i32
  }
  func.func @transform_4(%arg0: i32) -> (i32, i32) {
    %c0_i32 = arith.constant 0 : i32
    %c0_i32_0 = arith.constant 0 : i32
    %c0_i32_1 = arith.constant 0 : i32
    return %c0_i32, %c0_i32_0 : i32, i32
  }
  func.func @transform_5(%arg0: i32) -> (i32, i32) {
    %c0_i32 = arith.constant 0 : i32
    %c0_i32_0 = arith.constant 0 : i32
    %c0_i32_1 = arith.constant 0 : i32
    return %c0_i32, %c0_i32_0 : i32, i32
  }
  func.func @transform_6(%arg0: i32) -> (i32, i32) {
    %c0_i32 = arith.constant 0 : i32
    %c0_i32_0 = arith.constant 0 : i32
    %c0_i32_1 = arith.constant 0 : i32
    return %c0_i32, %c0_i32_0 : i32, i32
  }
  func.func @transform_7(%arg0: i32) -> (i32, i32) {
    %c0_i32 = arith.constant 0 : i32
    %c0_i32_0 = arith.constant 0 : i32
    %c0_i32_1 = arith.constant 0 : i32
    return %c0_i32, %c0_i32_0 : i32, i32
  }
  func.func @transform_8(%arg0: i32) -> (i32, i32) {
    %c0_i32 = arith.constant 0 : i32
    %c0_i32_0 = arith.constant 0 : i32
    %c0_i32_1 = arith.constant 0 : i32
    return %c0_i32, %c0_i32_0 : i32, i32
  }
}

</mosaic_0001>

<llo_original>
// kernel: mul.5
$region0: #{mul.5}
  %s0 = inlined_call_operand.vmem [shape: f32[12,8], index: 0, kind: input, shape index: {}]
  %s1 = inlined_call_operand.vmem [shape: f32[96], index: 1, kind: output, shape index: {}]
  $region1: #{mul.5} parent=0
    #allocation0 [shape = 'u8[4096]{0}', space=vmem, size = 0x1000, scoped, tag = 'scoped mem for output reshape']
    %v2 = vld [vmem:[%s0] sm:$0x1]
    %vm3 = vcmask 64512
    %4 = vst.msk [vmem:[#allocation0] sm:$0x1] %vm3, %v2
    %s5 = scalar_lea.vmem %s0, 11
    %v6 = vld [vmem:[%s5] sm:$0x1]
    %7 = vrot.lane.b32.xlu0 %v6, 88
    %v8 = vpop.permute.xlu0 %7
    %vm9 = vcmask 786112
    %10 = vst.msk [vmem:[#allocation0] sm:$0x1] %vm9, %v8
    %s11 = scalar_lea.vmem %s0, 10
    %v12 = vld [vmem:[%s11] sm:$0x1]
    %13 = vrot.lane.b32.xlu0 %v12, 80
    %v14 = vpop.permute.xlu0 %13
    %vm15 = vcmask 720512
    %16 = vst.msk [vmem:[#allocation0] sm:$0x1] %vm15, %v14
    %s17 = scalar_lea.vmem %s0, 9
    %v18 = vld [vmem:[%s17] sm:$0x1]
    %19 = vrot.lane.b32.xlu0 %v18, 72
    %v20 = vpop.permute.xlu0 %19
    %vm21 = vcmask 654912
    %22 = vst.msk [vmem:[#allocation0] sm:$0x1] %vm21, %v20
    %s23 = scalar_lea.vmem %s0, 8
    %v24 = vld [vmem:[%s23] sm:$0x1]
    %25 = vrot.lane.b32.xlu0 %v24, 64
    %v26 = vpop.permute.xlu0 %25
    %vm27 = vcmask 589312
    %28 = vst.msk [vmem:[#allocation0] sm:$0x1] %vm27, %v26
    %s29 = scalar_lea.vmem %s0, 7
    %v30 = vld [vmem:[%s29] sm:$0x1]
    %31 = vrot.lane.b32.xlu0 %v30, 56
    %v32 = vpop.permute.xlu0 %31
    %vm33 = vcmask 523712
    %34 = vst.msk [vmem:[#allocation0] sm:$0x1] %vm33, %v32
    %s35 = scalar_lea.vmem %s0, 6
    %v36 = vld [vmem:[%s35] sm:$0x1]
    %37 = vrot.lane.b32.xlu0 %v36, 48
    %v38 = vpop.permute.xlu0 %37
    %vm39 = vcmask 458112
    %40 = vst.msk [vmem:[#allocation0] sm:$0x1] %vm39, %v38
    %s41 = scalar_lea.vmem %s0, 5
    %v42 = vld [vmem:[%s41] sm:$0x1]
    %43 = vrot.lane.b32.xlu0 %v42, 40
    %v44 = vpop.permute.xlu0 %43
    %vm45 = vcmask 392512
    %46 = vst.msk [vmem:[#allocation0] sm:$0x1] %vm45, %v44
    %s47 = scalar_lea.vmem %s0, 4
    %v48 = vld [vmem:[%s47] sm:$0x1]
    %49 = vrot.lane.b32.xlu0 %v48, 32
    %v50 = vpop.permute.xlu0 %49
    %vm51 = vcmask 326912
    %52 = vst.msk [vmem:[#allocation0] sm:$0x1] %vm51, %v50
    %s53 = scalar_lea.vmem %s0, 3
    %v54 = vld [vmem:[%s53] sm:$0x1]
    %55 = vrot.lane.b32.xlu0 %v54, 24
    %v56 = vpop.permute.xlu0 %55
    %vm57 = vcmask 261312
    %58 = vst.msk [vmem:[#allocation0] sm:$0x1] %vm57, %v56
    %s59 = scalar_lea.vmem %s0, 2
    %v60 = vld [vmem:[%s59] sm:$0x1]
    %61 = vrot.lane.b32.xlu0 %v60, 16
    %v62 = vpop.permute.xlu0 %61
    %vm63 = vcmask 195712
    %64 = vst.msk [vmem:[#allocation0] sm:$0x1] %vm63, %v62
    %s65 = scalar_lea.vmem %s0, 1
    %v66 = vld [vmem:[%s65] sm:$0x1]
    %67 = vrot.lane.b32.xlu0 %v66, 8
    %v68 = vpop.permute.xlu0 %67
    %vm69 = vcmask 130112
    %70 = vst.msk [vmem:[#allocation0] sm:$0x1] %vm69, %v68
    %s72 = sshll.u32 1, 1
    %s73 = ssub.s32 %s72, 1
    %v75 = vld [vmem:[#allocation0] sm:%s73]
    %s76 = sshll.u32 1, 1
    %s77 = ssub.s32 %s76, 1
    %78 = vst [vmem:[%s1] sm:%s77] %v75

// kernel: wsd_forward.1
$region0: #{wsd_forward.1}
  #allocation0 [shape = 'u32[]', space=smem, size = 0x4, offset = 0x4, fixed_abs, tag = 'smem constant byte address 0x4 - core index']
  #allocation1 [shape = 'u32[144,128]{1,0:T(1,128)}', space=vmem, size = 0x12000, scoped, tag = 'internal scratch']
  %s0 = inlined_call_operand.vmem [shape: f32[96,32], index: 0, kind: input, shape index: {}]
  %s1 = inlined_call_operand.vmem [shape: f32[12,32], index: 1, kind: input, shape index: {}]
  %s2 = inlined_call_operand.vmem [shape: f32[12,96], index: 2, kind: input, shape index: {}]
  %s3 = inlined_call_operand.vmem [shape: f32[32,128], index: 3, kind: input, shape index: {}]
  %s4 = inlined_call_operand.vmem [shape: f32[96,64], index: 4, kind: input, shape index: {}]
  %s5 = inlined_call_operand.vmem [shape: f32[8,128], index: 5, kind: input, shape index: {}]
  %s6 = inlined_call_operand.vmem [shape: s32[2,1], index: 6, kind: input, shape index: {}]
  %s7 = inlined_call_operand.hbm [shape: f32[2,5], index: 7, kind: output, shape index: {0}]
  %s8 = inlined_call_operand.hbm [shape: f32[1,1], index: 8, kind: output, shape index: {1}]
  %9 = xla_tuple %s7, %s8
  %s10 = sld [smem:[#allocation0]]
  $region46: #{wsd_forward.1} parent=0
    _
  %s12 = ssub.s32 1, %s10
  %s13 = scalar_select 0, %s12, %s10
  $region1: #{wsd_forward.1} parent=0
    #allocation2 [shape = 'u8[1024]{0}', space=vmem, size = 0x400, scoped, tag = 'output window, operand 0, single buffered']
    #allocation3 [shape = 's32[1]{0}', space=sflag, size = 0x4, scoped, tag = 'scoped memory for wsd_forward.1']
    #allocation4 [shape = 'u8[512]{0}', space=vmem, size = 0x400, scoped, tag = 'output window, operand 1, single buffered']
    #allocation5 [shape = 's32[1]{0}', space=sflag, size = 0x4, scoped, tag = 'scoped memory for wsd_forward.1']
    %14 = vsyncpa [#allocation3], 0
    %15 = vsyncpa [#allocation5], 0
    // Predicated region
    $region2: #{wsd_forward.1} parent=1 // pred_check
      _
    $region3: #{wsd_forward.1} parent=1 // pred_check_branch
      %17 = sbr.rel (0) target = $region5
    $region4: #{wsd_forward.1} parent=1 // pred_region
      _
    $region5: #{wsd_forward.1} parent=1 // pred_fallthru
      _
    // Predicated region
    $region6: #{wsd_forward.1} parent=1 // pred_check
      _
    $region7: #{wsd_forward.1} parent=1 // pred_check_branch
      %19 = sbr.rel (0) target = $region9
    $region8: #{wsd_forward.1} parent=1 // pred_region
      _
    $region9: #{wsd_forward.1} parent=1 // pred_fallthru
      _
    // Predicated region
    $region10: #{wsd_forward.1} parent=1 // pred_check
      _
    $region11: #{wsd_forward.1} parent=1 // pred_check_branch
      %21 = sbr.rel (0) target = $region13
    $region12: #{wsd_forward.1} parent=1 // pred_region
      _
    $region13: #{wsd_forward.1} parent=1 // pred_fallthru
      _
    // Predicated region
    $region14: #{wsd_forward.1} parent=1 // pred_check
      _
    $region15: #{wsd_forward.1} parent=1 // pred_check_branch
      %23 = sbr.rel (0) target = $region17
    $region16: #{wsd_forward.1} parent=1 // pred_region
      _
    $region17: #{wsd_forward.1} parent=1 // pred_fallthru
      _
    // Predicated region
    $region18: #{wsd_forward.1} parent=1 // pred_check
      _
    $region19: #{wsd_forward.1} parent=1 // pred_check_branch
      %25 = sbr.rel (0) target = $region21
    $region20: #{wsd_forward.1} parent=1 // pred_region
      _
    $region21: #{wsd_forward.1} parent=1 // pred_fallthru
      _
    // Predicated region
    $region22: #{wsd_forward.1} parent=1 // pred_check
      _
    $region23: #{wsd_forward.1} parent=1 // pred_check_branch
      %27 = sbr.rel (0) target = $region25
    $region24: #{wsd_forward.1} parent=1 // pred_region
      _
    $region25: #{wsd_forward.1} parent=1 // pred_fallthru
      _
    // Predicated region
    $region26: #{wsd_forward.1} parent=1 // pred_check
      _
    $region27: #{wsd_forward.1} parent=1 // pred_check_branch
      %29 = sbr.rel (0) target = $region29
    $region28: #{wsd_forward.1} parent=1 // pred_region
      _
    $region29: #{wsd_forward.1} parent=1 // pred_fallthru
      _
    %v30 = vld [vmem:[%s0] sm:$0xff]
    %v31 = vld [vmem:[%s0 + $0x8] sm:$0xff]
    %v32 = vld [vmem:[%s0 + $0x10] sm:$0xff]
    %v33 = vld [vmem:[%s0 + $0x18] sm:$0xff]
    %v34 = vld [vmem:[%s0 + $0x20] sm:$0xff]
    %v35 = vld [vmem:[%s0 + $0x28] sm:$0xff]
    %v36 = vld [vmem:[%s0 + $0x30] sm:$0xff]
    %v37 = vld [vmem:[%s0 + $0x38] sm:$0xff]
    %v38 = vld [vmem:[%s0 + $0x40] sm:$0xff]
    %v39 = vld [vmem:[%s0 + $0x48] sm:$0xff]
    %v40 = vld [vmem:[%s0 + $0x50] sm:$0xff]
    %v41 = vld [vmem:[%s0 + $0x58] sm:$0xff]
    %v42 = vld [vmem:[%s1] sm:$0xff]
    %v43 = vld [vmem:[%s1 + $0x8] sm:$0xf]
    %v44 = vld [vmem:[%s2] sm:$0xff]
    %v45 = vld [vmem:[%s2 + $0x8] sm:$0xf]
    %v46 = vld [vmem:[%s3] sm:$0xff]
    %v47 = vld [vmem:[%s3 + $0x8] sm:$0xff]
    %v48 = vld [vmem:[%s3 + $0x10] sm:$0xff]
    %v49 = vld [vmem:[%s3 + $0x18] sm:$0xff]
    %v50 = vld [vmem:[%s4] sm:$0xff]
    %v51 = vld [vmem:[%s4 + $0x8] sm:$0xff]
    %v52 = vld [vmem:[%s4 + $0x10] sm:$0xff]
    %v53 = vld [vmem:[%s4 + $0x18] sm:$0xff]
    %v54 = vld [vmem:[%s4 + $0x20] sm:$0xff]
    %v55 = vld [vmem:[%s4 + $0x28] sm:$0xff]
    %v56 = vld [vmem:[%s4 + $0x30] sm:$0xff]
    %v57 = vld [vmem:[%s4 + $0x38] sm:$0xff]
    %v58 = vld [vmem:[%s4 + $0x40] sm:$0xff]
    %v59 = vld [vmem:[%s4 + $0x48] sm:$0xff]
    %v60 = vld [vmem:[%s4 + $0x50] sm:$0xff]
    %v61 = vld [vmem:[%s4 + $0x58] sm:$0xff]
    %v62 = vld [vmem:[%s5] sm:$0xff]
    %vm63 = vcmask 261120
    %v65 = vsel %vm63, %v30, 0
    %v68 = vsel %vm63, %v31, 0
    %v71 = vsel %vm63, %v32, 0
    %v74 = vsel %vm63, %v33, 0
    %v77 = vsel %vm63, %v34, 0
    %v80 = vsel %vm63, %v35, 0
    %v83 = vsel %vm63, %v36, 0
    %v86 = vsel %vm63, %v37, 0
    %v89 = vsel %vm63, %v38, 0
    %v92 = vsel %vm63, %v39, 0
    %v95 = vsel %vm63, %v40, 0
    %v98 = vsel %vm63, %v41, 0
    %100 = vmatprep.subr.mxu0 0.0
    %101 = vmatpush1.msra.mxu0 0.0
    %102 = vmatprep.subr.mxu0 0.0
    %103 = vmatpush1.msra.mxu0 0.0
    %104 = vmatprep.subr.mxu0 0.0
    %105 = vmatpush1.msra.mxu0 0.0
    %106 = vmatprep.subr.mxu0 0.0
    %107 = vmatpush1.msra.mxu0 0.0
    %108 = vmatprep.subr.mxu0 0.0
    %109 = vmatpush1.msra.mxu0 0.0
    %110 = vmatprep.subr.mxu0 0.0
    %111 = vmatpush1.msra.mxu0 0.0
    %112 = vmatprep.subr.mxu0 0.0
    %113 = vmatpush1.msra.mxu0 0.0
    %114 = vmatprep.subr.mxu0 0.0
    %115 = vmatpush1.msra.mxu0 0.0
    %116 = vmatprep.subr.mxu0 0.0
    %117 = vmatpush1.msra.mxu0 0.0
    %118 = vmatprep.subr.mxu0 0.0
    %119 = vmatpush1.msra.mxu0 0.0
    %120 = vmatprep.subr.mxu0 0.0
    %121 = vmatpush1.msra.mxu0 0.0
    %122 = vmatprep.subr.mxu0 0.0
    %123 = vmatpush1.msra.mxu0 0.0
    %124 = vmatprep.subr.mxu0 0.0
    %125 = vmatpush1.msra.mxu0 %v49
    %126 = vmatprep.subr.mxu0 0.0
    %127 = vmatpush1.msra.mxu0 %v48
    %128 = vmatprep.subr.mxu0 0.0
    %129 = vmatpush1.msra.mxu0 %v47
    %130 = vmatprep.subr.mxu0 0.0
    %131 = vmatpush1.msra.mxu0 %v46
    %132 = vmatprep.subr.mxu0 0.0
    %133 = vmatpush2.msra.mxu0 0.0
    %134 = vmatprep.subr.mxu0 0.0
    %135 = vmatpush2.msra.mxu0 0.0
    %136 = vmatprep.subr.mxu0 0.0
    %137 = vmatpush2.msra.mxu0 0.0
    %138 = vmatprep.subr.mxu0 0.0
    %139 = vmatpush2.msra.mxu0 0.0
    %140 = vmatprep.subr.mxu0 0.0
    %141 = vmatpush2.msra.mxu0 0.0
    %142 = vmatprep.subr.mxu0 0.0
    %143 = vmatpush2.msra.mxu0 0.0
    %144 = vmatprep.subr.mxu0 0.0
    %145 = vmatpush2.msra.mxu0 0.0
    %146 = vmatprep.subr.mxu0 0.0
    %147 = vmatpush2.msra.mxu0 0.0
    %148 = vmatprep.subr.mxu0 0.0
    %149 = vmatpush2.msra.mxu0 0.0
    %150 = vmatprep.subr.mxu0 0.0
    %151 = vmatpush2.msra.mxu0 0.0
    %152 = vmatprep.subr.mxu0 0.0
    %153 = vmatpush2.msra.mxu0 0.0
    %154 = vmatprep.subr.mxu0 0.0
    %155 = vmatpush2.msra.mxu0 0.0
    %156 = vmatprep.subr.mxu0 0.0
    %157 = vmatpush2.msra.mxu0 0.0
    %158 = vmatprep.subr.mxu0 0.0
    %159 = vmatpush2.msra.mxu0 0.0
    %160 = vmatprep.subr.mxu0 0.0
    %161 = vmatpush2.msra.mxu0 0.0
    %162 = vmatprep.subr.mxu0 0.0
    %163 = vmatpush2.msra.mxu0 0.0
    %164 = vmatprep.mubr.f32.mxu0 0.0
    %165 = vmatmul.mubr.f32.gmra.mxu0 %v65
    %v166 = vpop.f32.mrf.mxu0
    %v167 = vadd.f32 0.0, %v166
    %v168 = vpop.f32.mrf.mxu0
    %169 = vmatprep.mubr.f32.mxu0 0.0
    %170 = vmatmul.mubr.f32.gmra.mxu0 %v68
    %v171 = vpop.f32.mrf.mxu0
    %v172 = vadd.f32 0.0, %v171
    %v173 = vpop.f32.mrf.mxu0
    %174 = vmatprep.mubr.f32.mxu0 0.0
    %175 = vmatmul.mubr.f32.gmra.mxu0 %v71
    %v176 = vpop.f32.mrf.mxu0
    %v177 = vadd.f32 0.0, %v176
    %v178 = vpop.f32.mrf.mxu0
    %179 = vmatprep.mubr.f32.mxu0 0.0
    %180 = vmatmul.mubr.f32.gmra.mxu0 %v74
    %v181 = vpop.f32.mrf.mxu0
    %v182 = vadd.f32 0.0, %v181
    %v183 = vpop.f32.mrf.mxu0
    %184 = vmatprep.mubr.f32.mxu0 0.0
    %185 = vmatmul.mubr.f32.gmra.mxu0 %v77
    %v186 = vpop.f32.mrf.mxu0
    %v187 = vadd.f32 0.0, %v186
    %v188 = vpop.f32.mrf.mxu0
    %189 = vmatprep.mubr.f32.mxu0 0.0
    %190 = vmatmul.mubr.f32.gmra.mxu0 %v80
    %v191 = vpop.f32.mrf.mxu0
    %v192 = vadd.f32 0.0, %v191
    %v193 = vpop.f32.mrf.mxu0
    %194 = vmatprep.mubr.f32.mxu0 0.0
    %195 = vmatmul.mubr.f32.gmra.mxu0 %v83
    %v196 = vpop.f32.mrf.mxu0
    %v197 = vadd.f32 0.0, %v196
    %v198 = vpop.f32.mrf.mxu0
    %199 = vmatprep.mubr.f32.mxu0 0.0
    %200 = vmatmul.mubr.f32.gmra.mxu0 %v86
    %v201 = vpop.f32.mrf.mxu0
    %v202 = vadd.f32 0.0, %v201
    %v203 = vpop.f32.mrf.mxu0
    %204 = vmatprep.mubr.f32.mxu0 0.0
    %205 = vmatmul.mubr.f32.gmra.mxu0 %v89
    %v206 = vpop.f32.mrf.mxu0
    %v207 = vadd.f32 0.0, %v206
    %v208 = vpop.f32.mrf.mxu0
    %209 = vmatprep.mubr.f32.mxu0 0.0
    %210 = vmatmul.mubr.f32.gmra.mxu0 %v92
    %v211 = vpop.f32.mrf.mxu0
    %v212 = vadd.f32 0.0, %v211
    %v213 = vpop.f32.mrf.mxu0
    %214 = vmatprep.mubr.f32.mxu0 0.0
    %215 = vmatmul.mubr.f32.gmra.mxu0 %v95
    %v216 = vpop.f32.mrf.mxu0
    %v217 = vadd.f32 0.0, %v216
    %v218 = vpop.f32.mrf.mxu0
    %219 = vmatprep.mubr.f32.mxu0 0.0
    %220 = vmatmul.mubr.f32.gmra.mxu0 %v98
    %v221 = vpop.f32.mrf.mxu0
    %v222 = vadd.f32 0.0, %v221
    %v223 = vpop.f32.mrf.mxu0
    %224 = vdwg.mxu0
    %229 = vrot.lane.b32.xlu0 %v46, 64
    %v230 = vpop.permute.xlu0 %229
    %231 = vrot.lane.b32.xlu0 %v47, 64
    %v232 = vpop.permute.xlu0 %231
    %233 = vrot.lane.b32.xlu0 %v48, 64
    %v234 = vpop.permute.xlu0 %233
    %235 = vrot.lane.b32.xlu0 %v49, 64
    %v236 = vpop.permute.xlu0 %235
    %v242 = vsel %vm63, %v42, 0
    %v245 = vsel %vm63, %v43, 0
    %247 = vmatprep.subr.mxu0 0.0
    %248 = vmatpush1.msra.mxu0 0.0
    %249 = vmatprep.subr.mxu0 0.0
    %250 = vmatpush1.msra.mxu0 0.0
    %251 = vmatprep.subr.mxu0 0.0
    %252 = vmatpush1.msra.mxu0 0.0
    %253 = vmatprep.subr.mxu0 0.0
    %254 = vmatpush1.msra.mxu0 0.0
    %255 = vmatprep.subr.mxu0 0.0
    %256 = vmatpush1.msra.mxu0 0.0
    %257 = vmatprep.subr.mxu0 0.0
    %258 = vmatpush1.msra.mxu0 0.0
    %259 = vmatprep.subr.mxu0 0.0
    %260 = vmatpush1.msra.mxu0 0.0
    %261 = vmatprep.subr.mxu0 0.0
    %262 = vmatpush1.msra.mxu0 0.0
    %263 = vmatprep.subr.mxu0 0.0
    %264 = vmatpush1.msra.mxu0 0.0
    %265 = vmatprep.subr.mxu0 0.0
    %266 = vmatpush1.msra.mxu0 0.0
    %267 = vmatprep.subr.mxu0 0.0
    %268 = vmatpush1.msra.mxu0 0.0
    %269 = vmatprep.subr.mxu0 0.0
    %270 = vmatpush1.msra.mxu0 0.0
    %271 = vmatprep.subr.mxu0 0.0
    %272 = vmatpush1.msra.mxu0 %v236
    %273 = vmatprep.subr.mxu0 0.0
    %274 = vmatpush1.msra.mxu0 %v234
    %275 = vmatprep.subr.mxu0 0.0
    %276 = vmatpush1.msra.mxu0 %v232
    %277 = vmatprep.subr.mxu0 0.0
    %278 = vmatpush1.msra.mxu0 %v230
    %279 = vmatprep.subr.mxu0 0.0
    %280 = vmatpush2.msra.mxu0 0.0
    %281 = vmatprep.subr.mxu0 0.0
    %282 = vmatpush2.msra.mxu0 0.0
    %283 = vmatprep.subr.mxu0 0.0
    %284 = vmatpush2.msra.mxu0 0.0
    %285 = vmatprep.subr.mxu0 0.0
    %286 = vmatpush2.msra.mxu0 0.0
    %287 = vmatprep.subr.mxu0 0.0
    %288 = vmatpush2.msra.mxu0 0.0
    %289 = vmatprep.subr.mxu0 0.0
    %290 = vmatpush2.msra.mxu0 0.0
    %291 = vmatprep.subr.mxu0 0.0
    %292 = vmatpush2.msra.mxu0 0.0
    %293 = vmatprep.subr.mxu0 0.0
    %294 = vmatpush2.msra.mxu0 0.0
    %295 = vmatprep.subr.mxu0 0.0
    %296 = vmatpush2.msra.mxu0 0.0
    %297 = vmatprep.subr.mxu0 0.0
    %298 = vmatpush2.msra.mxu0 0.0
    %299 = vmatprep.subr.mxu0 0.0
    %300 = vmatpush2.msra.mxu0 0.0
    %301 = vmatprep.subr.mxu0 0.0
    %302 = vmatpush2.msra.mxu0 0.0
    %303 = vmatprep.subr.mxu0 0.0
    %304 = vmatpush2.msra.mxu0 0.0
    %305 = vmatprep.subr.mxu0 0.0
    %306 = vmatpush2.msra.mxu0 0.0
    %307 = vmatprep.subr.mxu0 0.0
    %308 = vmatpush2.msra.mxu0 0.0
    %309 = vmatprep.subr.mxu0 0.0
    %310 = vmatpush2.msra.mxu0 0.0
    %311 = vmatprep.mubr.f32.mxu0 0.0
    %312 = vmatmul.mubr.f32.gmra.mxu0 %v242
    %v313 = vpop.f32.mrf.mxu0
    %v314 = vadd.f32 0.0, %v313
    %v315 = vpop.f32.mrf.mxu0
    %316 = vmatprep.mubr.f32.mxu0 0.0
    %317 = vmatmul.mubr.f32.gmra.mxu0 %v245
    %v318 = vpop.f32.mrf.mxu0
    %v319 = vadd.f32 0.0, %v318
    %v320 = vpop.f32.mrf.mxu0
    %321 = vdwg.mxu0
    %v323 = vsel %vm63, %v314, 0
    %v326 = vsel %vm63, %v319, 0
    %v329 = vsel %vm63, %v167, 0
    %v332 = vsel %vm63, %v172, 0
    %v335 = vsel %vm63, %v177, 0
    %v338 = vsel %vm63, %v182, 0
    %v341 = vsel %vm63, %v187, 0
    %v344 = vsel %vm63, %v192, 0
    %v347 = vsel %vm63, %v197, 0
    %v350 = vsel %vm63, %v202, 0
    %v353 = vsel %vm63, %v207, 0
    %v356 = vsel %vm63, %v212, 0
    %v359 = vsel %vm63, %v217, 0
    %v362 = vsel %vm63, %v222, 0
    %364 = vmatprep.subr.mxu0 0.0
    %365 = vmatpush1.xpose.msra.mxu0 0.0
    %366 = vmatprep.subr.mxu0 0.0
    %367 = vmatpush1.xpose.msra.mxu0 0.0
    %368 = vmatprep.subr.mxu0 0.0
    %369 = vmatpush1.xpose.msra.mxu0 0.0
    %370 = vmatprep.subr.mxu0 0.0
    %371 = vmatpush1.xpose.msra.mxu0 0.0
    %372 = vmatprep.subr.mxu0 0.0
    %373 = vmatpush1.xpose.msra.mxu0 %v362
    %374 = vmatprep.subr.mxu0 0.0
    %375 = vmatpush1.xpose.msra.mxu0 %v359
    %376 = vmatprep.subr.mxu0 0.0
    %377 = vmatpush1.xpose.msra.mxu0 %v356
    %378 = vmatprep.subr.mxu0 0.0
    %379 = vmatpush1.xpose.msra.mxu0 %v353
    %380 = vmatprep.subr.mxu0 0.0
    %381 = vmatpush1.xpose.msra.mxu0 %v350
    %382 = vmatprep.subr.mxu0 0.0
    %383 = vmatpush1.xpose.msra.mxu0 %v347
    %384 = vmatprep.subr.mxu0 0.0
    %385 = vmatpush1.xpose.msra.mxu0 %v344
    %386 = vmatprep.subr.mxu0 0.0
    %387 = vmatpush1.xpose.msra.mxu0 %v341
    %388 = vmatprep.subr.mxu0 0.0
    %389 = vmatpush1.xpose.msra.mxu0 %v338
    %390 = vmatprep.subr.mxu0 0.0
    %391 = vmatpush1.xpose.msra.mxu0 %v335
    %392 = vmatprep.subr.mxu0 0.0
    %393 = vmatpush1.xpose.msra.mxu0 %v332
    %394 = vmatprep.subr.mxu0 0.0
    %395 = vmatpush1.xpose.msra.mxu0 %v329
    %396 = vmatprep.subr.mxu0 0.0
    %397 = vmatpush2.xpose.msra.mxu0 0.0
    %398 = vmatprep.subr.mxu0 0.0
    %399 = vmatpush2.xpose.msra.mxu0 0.0
    %400 = vmatprep.subr.mxu0 0.0
    %401 = vmatpush2.xpose.msra.mxu0 0.0
    %402 = vmatprep.subr.mxu0 0.0
    %403 = vmatpush2.xpose.msra.mxu0 0.0
    %404 = vmatprep.subr.mxu0 0.0
    %405 = vmatpush2.xpose.msra.mxu0 0.0
    %406 = vmatprep.subr.mxu0 0.0
    %407 = vmatpush2.xpose.msra.mxu0 0.0
    %408 = vmatprep.subr.mxu0 0.0
    %409 = vmatpush2.xpose.msra.mxu0 0.0
    %410 = vmatprep.subr.mxu0 0.0
    %411 = vmatpush2.xpose.msra.mxu0 0.0
    %412 = vmatprep.subr.mxu0 0.0
    %413 = vmatpush2.xpose.msra.mxu0 0.0
    %414 = vmatprep.subr.mxu0 0.0
    %415 = vmatpush2.xpose.msra.mxu0 0.0
    %416 = vmatprep.subr.mxu0 0.0
    %417 = vmatpush2.xpose.msra.mxu0 0.0
    %418 = vmatprep.subr.mxu0 0.0
    %419 = vmatpush2.xpose.msra.mxu0 0.0
    %420 = vmatprep.subr.mxu0 0.0
    %421 = vmatpush2.xpose.msra.mxu0 0.0
    %422 = vmatprep.subr.mxu0 0.0
    %423 = vmatpush2.xpose.msra.mxu0 0.0
    %424 = vmatprep.subr.mxu0 0.0
    %425 = vmatpush2.xpose.msra.mxu0 0.0
    %426 = vmatprep.subr.mxu0 0.0
    %427 = vmatpush2.xpose.msra.mxu0 0.0
    %428 = vmatprep.mubr.f32.mxu0 0.0
    %429 = vmatmul.mubr.f32.gmra.mxu0 %v323
    %v430 = vpop.f32.mrf.mxu0
    %v431 = vadd.f32 0.0, %v430
    %v432 = vpop.f32.mrf.mxu0
    %433 = vmatprep.mubr.f32.mxu0 0.0
    %434 = vmatmul.mubr.f32.gmra.mxu0 %v326
    %v435 = vpop.f32.mrf.mxu0
    %v436 = vadd.f32 0.0, %v435
    %v437 = vpop.f32.mrf.mxu0
    %438 = vdwg.mxu0
    %v439 = vmul.f32 %v431, 0.17677669
    %v440 = vmul.f32 %v436, 0.17677669
    %v441 = vsub.f32 %v44, 1.0
    %v442 = vsub.f32 %v45, 1.0
    %v443 = vmul.f32 %v441, 1e+09
    %v444 = vmul.f32 %v442, 1e+09
    %v445 = vadd.f32 %v439, %v443
    %v446 = vadd.f32 %v440, %v444
    %vm447 = vcmask 785408
    %v448 = vsel %vm447, %v445, -inf
    %449 = vmax.xlane.f32.xlu0 %v448
    %v450 = vpop.xlane.xlu0 %449
    %vm451 = vcmask 781312
    %v452 = vsel %vm451, %v446, -inf
    %453 = vmax.xlane.f32.xlu0 %v452
    %v454 = vpop.xlane.xlu0 %453
    %v455 = vsub.f32 %v445, %v450
    %v456 = vsub.f32 %v446, %v454
    %v457 = vmul.f32 %v455, 1.442695
    %v458 = vpow.pop %v457
    %v459 = vmul.f32 %v456, 1.442695
    %v460 = vpow.pop %v459
    %v461 = vsel %vm447, %v458, 0.0
    %462 = vadd.xlane.f32.xlu0 %v461
    %v463 = vpop.xlane.xlu0 %462
    %v464 = vsel %vm451, %v460, 0.0
    %465 = vadd.xlane.f32.xlu0 %v464
    %v466 = vpop.xlane.xlu0 %465
    %v467 = vrcp.pop %v463
    %v468 = vmul.f32 %v458, %v467
    %v469 = vrcp.pop %v466
    %v470 = vmul.f32 %v460, %v469
    %471 = vrot.lane.b32.xlu0 %v167, 96
    %v472 = vpop.permute.xlu0 %471
    %473 = vrot.lane.b32.xlu0 %v172, 96
    %v474 = vpop.permute.xlu0 %473
    %475 = vrot.lane.b32.xlu0 %v177, 96
    %v476 = vpop.permute.xlu0 %475
    %477 = vrot.lane.b32.xlu0 %v182, 96
    %v478 = vpop.permute.xlu0 %477
    %479 = vrot.lane.b32.xlu0 %v187, 96
    %v480 = vpop.permute.xlu0 %479
    %481 = vrot.lane.b32.xlu0 %v192, 96
    %v482 = vpop.permute.xlu0 %481
    %483 = vrot.lane.b32.xlu0 %v197, 96
    %v484 = vpop.permute.xlu0 %483
    %485 = vrot.lane.b32.xlu0 %v202, 96
    %v486 = vpop.permute.xlu0 %485
    %487 = vrot.lane.b32.xlu0 %v207, 96
    %v488 = vpop.permute.xlu0 %487
    %489 = vrot.lane.b32.xlu0 %v212, 96
    %v490 = vpop.permute.xlu0 %489
    %491 = vrot.lane.b32.xlu0 %v217, 96
    %v492 = vpop.permute.xlu0 %491
    %493 = vrot.lane.b32.xlu0 %v222, 96
    %v494 = vpop.permute.xlu0 %493
    %v508 = vsel %vm447, %v468, 0
    %v511 = vsel %vm447, %v470, 0
    %513 = vmatprep.subr.mxu0 0.0
    %514 = vmatpush1.msra.mxu0 0.0
    %515 = vmatprep.subr.mxu0 0.0
    %516 = vmatpush1.msra.mxu0 0.0
    %517 = vmatprep.subr.mxu0 0.0
    %518 = vmatpush1.msra.mxu0 0.0
    %519 = vmatprep.subr.mxu0 0.0
    %520 = vmatpush1.msra.mxu0 0.0
    %521 = vmatprep.subr.mxu0 0.0
    %522 = vmatpush1.msra.mxu0 %v494
    %523 = vmatprep.subr.mxu0 0.0
    %524 = vmatpush1.msra.mxu0 %v492
    %525 = vmatprep.subr.mxu0 0.0
    %526 = vmatpush1.msra.mxu0 %v490
    %527 = vmatprep.subr.mxu0 0.0
    %528 = vmatpush1.msra.mxu0 %v488
    %529 = vmatprep.subr.mxu0 0.0
    %530 = vmatpush1.msra.mxu0 %v486
    %531 = vmatprep.subr.mxu0 0.0
    %532 = vmatpush1.msra.mxu0 %v484
    %533 = vmatprep.subr.mxu0 0.0
    %534 = vmatpush1.msra.mxu0 %v482
    %535 = vmatprep.subr.mxu0 0.0
    %536 = vmatpush1.msra.mxu0 %v480
    %537 = vmatprep.subr.mxu0 0.0
    %538 = vmatpush1.msra.mxu0 %v478
    %539 = vmatprep.subr.mxu0 0.0
    %540 = vmatpush1.msra.mxu0 %v476
    %541 = vmatprep.subr.mxu0 0.0
    %542 = vmatpush1.msra.mxu0 %v474
    %543 = vmatprep.subr.mxu0 0.0
    %544 = vmatpush1.msra.mxu0 %v472
    %545 = vmatprep.subr.mxu0 0.0
    %546 = vmatpush2.msra.mxu0 0.0
    %547 = vmatprep.subr.mxu0 0.0
    %548 = vmatpush2.msra.mxu0 0.0
    %549 = vmatprep.subr.mxu0 0.0
    %550 = vmatpush2.msra.mxu0 0.0
    %551 = vmatprep.subr.mxu0 0.0
    %552 = vmatpush2.msra.mxu0 0.0
    %553 = vmatprep.subr.mxu0 0.0
    %554 = vmatpush2.msra.mxu0 0.0
    %555 = vmatprep.subr.mxu0 0.0
    %556 = vmatpush2.msra.mxu0 0.0
    %557 = vmatprep.subr.mxu0 0.0
    %558 = vmatpush2.msra.mxu0 0.0
    %559 = vmatprep.subr.mxu0 0.0
    %560 = vmatpush2.msra.mxu0 0.0
    %561 = vmatprep.subr.mxu0 0.0
    %562 = vmatpush2.msra.mxu0 0.0
    %563 = vmatprep.subr.mxu0 0.0
    %564 = vmatpush2.msra.mxu0 0.0
    %565 = vmatprep.subr.mxu0 0.0
    %566 = vmatpush2.msra.mxu0 0.0
    %567 = vmatprep.subr.mxu0 0.0
    %568 = vmatpush2.msra.mxu0 0.0
    %569 = vmatprep.subr.mxu0 0.0
    %570 = vmatpush2.msra.mxu0 0.0
    %571 = vmatprep.subr.mxu0 0.0
    %572 = vmatpush2.msra.mxu0 0.0
    %573 = vmatprep.subr.mxu0 0.0
    %574 = vmatpush2.msra.mxu0 0.0
    %575 = vmatprep.subr.mxu0 0.0
    %576 = vmatpush2.msra.mxu0 0.0
    %577 = vmatprep.mubr.f32.mxu0 0.0
    %578 = vmatmul.mubr.f32.gmra.mxu0 %v508
    %v579 = vpop.f32.mrf.mxu0
    %v580 = vadd.f32 0.0, %v579
    %v581 = vpop.f32.mrf.mxu0
    %582 = vmatprep.mubr.f32.mxu0 0.0
    %583 = vmatmul.mubr.f32.gmra.mxu0 %v511
    %v584 = vpop.f32.mrf.mxu0
    %v585 = vadd.f32 0.0, %v584
    %v586 = vpop.f32.mrf.mxu0
    %587 = vdwg.mxu0
    %588 = vrot.lane.b32.xlu0 %v46, 32
    %v589 = vpop.permute.xlu0 %588
    %590 = vrot.lane.b32.xlu0 %v47, 32
    %v591 = vpop.permute.xlu0 %590
    %592 = vrot.lane.b32.xlu0 %v48, 32
    %v593 = vpop.permute.xlu0 %592
    %594 = vrot.lane.b32.xlu0 %v49, 32
    %v595 = vpop.permute.xlu0 %594
    %v601 = vsel %vm63, %v580, 0
    %v604 = vsel %vm63, %v585, 0
    %606 = vmatprep.subr.mxu0 0.0
    %607 = vmatpush1.msra.mxu0 0.0
    %608 = vmatprep.subr.mxu0 0.0
    %609 = vmatpush1.msra.mxu0 0.0
    %610 = vmatprep.subr.mxu0 0.0
    %611 = vmatpush1.msra.mxu0 0.0
    %612 = vmatprep.subr.mxu0 0.0
    %613 = vmatpush1.msra.mxu0 0.0
    %614 = vmatprep.subr.mxu0 0.0
    %615 = vmatpush1.msra.mxu0 0.0
    %616 = vmatprep.subr.mxu0 0.0
    %617 = vmatpush1.msra.mxu0 0.0
    %618 = vmatprep.subr.mxu0 0.0
    %619 = vmatpush1.msra.mxu0 0.0
    %620 = vmatprep.subr.mxu0 0.0
    %621 = vmatpush1.msra.mxu0 0.0
    %622 = vmatprep.subr.mxu0 0.0
    %623 = vmatpush1.msra.mxu0 0.0
    %624 = vmatprep.subr.mxu0 0.0
    %625 = vmatpush1.msra.mxu0 0.0
    %626 = vmatprep.subr.mxu0 0.0
    %627 = vmatpush1.msra.mxu0 0.0
    %628 = vmatprep.subr.mxu0 0.0
    %629 = vmatpush1.msra.mxu0 0.0
    %630 = vmatprep.subr.mxu0 0.0
    %631 = vmatpush1.msra.mxu0 %v595
    %632 = vmatprep.subr.mxu0 0.0
    %633 = vmatpush1.msra.mxu0 %v593
    %634 = vmatprep.subr.mxu0 0.0
    %635 = vmatpush1.msra.mxu0 %v591
    %636 = vmatprep.subr.mxu0 0.0
    %637 = vmatpush1.msra.mxu0 %v589
    %638 = vmatprep.subr.mxu0 0.0
    %639 = vmatpush2.msra.mxu0 0.0
    %640 = vmatprep.subr.mxu0 0.0
    %641 = vmatpush2.msra.mxu0 0.0
    %642 = vmatprep.subr.mxu0 0.0
    %643 = vmatpush2.msra.mxu0 0.0
    %644 = vmatprep.subr.mxu0 0.0
    %645 = vmatpush2.msra.mxu0 0.0
    %646 = vmatprep.subr.mxu0 0.0
    %647 = vmatpush2.msra.mxu0 0.0
    %648 = vmatprep.subr.mxu0 0.0
    %649 = vmatpush2.msra.mxu0 0.0
    %650 = vmatprep.subr.mxu0 0.0
    %651 = vmatpush2.msra.mxu0 0.0
    %652 = vmatprep.subr.mxu0 0.0
    %653 = vmatpush2.msra.mxu0 0.0
    %654 = vmatprep.subr.mxu0 0.0
    %655 = vmatpush2.msra.mxu0 0.0
    %656 = vmatprep.subr.mxu0 0.0
    %657 = vmatpush2.msra.mxu0 0.0
    %658 = vmatprep.subr.mxu0 0.0
    %659 = vmatpush2.msra.mxu0 0.0
    %660 = vmatprep.subr.mxu0 0.0
    %661 = vmatpush2.msra.mxu0 0.0
    %662 = vmatprep.subr.mxu0 0.0
    %663 = vmatpush2.msra.mxu0 0.0
    %664 = vmatprep.subr.mxu0 0.0
    %665 = vmatpush2.msra.mxu0 0.0
    %666 = vmatprep.subr.mxu0 0.0
    %667 = vmatpush2.msra.mxu0 0.0
    %668 = vmatprep.subr.mxu0 0.0
    %669 = vmatpush2.msra.mxu0 0.0
    %670 = vmatprep.mubr.f32.mxu0 0.0
    %671 = vmatmul.mubr.f32.gmra.mxu0 %v601
    %v672 = vpop.f32.mrf.mxu0
    %v673 = vadd.f32 0.0, %v672
    %v674 = vpop.f32.mrf.mxu0
    %675 = vmatprep.mubr.f32.mxu0 0.0
    %676 = vmatmul.mubr.f32.gmra.mxu0 %v604
    %v677 = vpop.f32.mrf.mxu0
    %v678 = vadd.f32 0.0, %v677
    %v679 = vpop.f32.mrf.mxu0
    %680 = vdwg.mxu0
    %v681 = vadd.f32 %v42, %v673
    %v682 = vadd.f32 %v43, %v678
    %v683 = vsel %vm63, %v681, 0.0
    %684 = vadd.xlane.f32.xlu0 %v683
    %v685 = vpop.xlane.xlu0 %684
    %vm686 = vcmask 257024
    %v687 = vsel %vm686, %v682, 0.0
    %688 = vadd.xlane.f32.xlu0 %v687
    %v689 = vpop.xlane.xlu0 %688
    %v690 = vrcp.pop 32.0
    %v691 = vmul.f32 %v685, %v690
    %v692 = vmul.f32 %v689, %v690
    %v693 = vsub.f32 %v681, %v691
    %v694 = vsub.f32 %v682, %v692
    %v695 = vmul.f32 %v693, %v693
    %v696 = vmul.f32 %v694, %v694
    %v697 = vsel %vm63, %v695, 0.0
    %698 = vadd.xlane.f32.xlu0 %v697
    %v699 = vpop.xlane.xlu0 %698
    %v700 = vsel %vm686, %v696, 0.0
    %701 = vadd.xlane.f32.xlu0 %v700
    %v702 = vpop.xlane.xlu0 %701
    %v703 = vmul.f32 %v699, %v690
    %v704 = vmul.f32 %v702, %v690
    %v705 = vadd.f32 %v703, 1e-05
    %v706 = vadd.f32 %v704, 1e-05
    %v707 = vrsqrt.pop %v705
    %v708 = vrsqrt.pop %v706
    %v709 = vmul.f32 %v693, %v707
    %v710 = vmul.f32 %v694, %v708
    %v711 = vlaneseq
    %v712 = vshrl.u32 %v711, 7
    %v713 = vsub.s32 2, %v712
    %v714 = vrot.slane %v62, %v713
    %v715 = vmul.f32 %v709, %v714
    %v716 = vmul.f32 %v710, %v714
    %v717 = vlaneseq
    %v718 = vshrl.u32 %v717, 7
    %v719 = vsub.s32 3, %v718
    %v720 = vrot.slane %v62, %v719
    %v721 = vadd.f32 %v715, %v720
    %v722 = vadd.f32 %v716, %v720
    %v723 = vlaneseq
    %v724 = vshrl.u32 %v723, 7
    %v725 = vsub.s32 0, %v724
    %v726 = vrot.slane %v62, %v725
    %v728 = vsel %vm63, %v721, 0
    %v731 = vsel %vm63, %v722, 0
    %733 = vmatprep.subr.mxu0 0.0
    %734 = vmatpush1.msra.mxu0 0.0
    %735 = vmatprep.subr.mxu0 0.0
    %736 = vmatpush1.msra.mxu0 0.0
    %737 = vmatprep.subr.mxu0 0.0
    %738 = vmatpush1.msra.mxu0 0.0
    %739 = vmatprep.subr.mxu0 0.0
    %740 = vmatpush1.msra.mxu0 0.0
    %741 = vmatprep.subr.mxu0 0.0
    %742 = vmatpush1.msra.mxu0 0.0
    %743 = vmatprep.subr.mxu0 0.0
    %744 = vmatpush1.msra.mxu0 0.0
    %745 = vmatprep.subr.mxu0 0.0
    %746 = vmatpush1.msra.mxu0 0.0
    %747 = vmatprep.subr.mxu0 0.0
    %748 = vmatpush1.msra.mxu0 0.0
    %749 = vmatprep.subr.mxu0 0.0
    %750 = vmatpush1.msra.mxu0 0.0
    %751 = vmatprep.subr.mxu0 0.0
    %752 = vmatpush1.msra.mxu0 0.0
    %753 = vmatprep.subr.mxu0 0.0
    %754 = vmatpush1.msra.mxu0 0.0
    %755 = vmatprep.subr.mxu0 0.0
    %756 = vmatpush1.msra.mxu0 0.0
    %757 = vmatprep.subr.mxu0 0.0
    %758 = vmatpush1.msra.mxu0 %v53
    %759 = vmatprep.subr.mxu0 0.0
    %760 = vmatpush1.msra.mxu0 %v52
    %761 = vmatprep.subr.mxu0 0.0
    %762 = vmatpush1.msra.mxu0 %v51
    %763 = vmatprep.subr.mxu0 0.0
    %764 = vmatpush1.msra.mxu0 %v50
    %765 = vmatprep.subr.mxu0 0.0
    %766 = vmatpush2.msra.mxu0 0.0
    %767 = vmatprep.subr.mxu0 0.0
    %768 = vmatpush2.msra.mxu0 0.0
    %769 = vmatprep.subr.mxu0 0.0
    %770 = vmatpush2.msra.mxu0 0.0
    %771 = vmatprep.subr.mxu0 0.0
    %772 = vmatpush2.msra.mxu0 0.0
    %773 = vmatprep.subr.mxu0 0.0
    %774 = vmatpush2.msra.mxu0 0.0
    %775 = vmatprep.subr.mxu0 0.0
    %776 = vmatpush2.msra.mxu0 0.0
    %777 = vmatprep.subr.mxu0 0.0
    %778 = vmatpush2.msra.mxu0 0.0
    %779 = vmatprep.subr.mxu0 0.0
    %780 = vmatpush2.msra.mxu0 0.0
    %781 = vmatprep.subr.mxu0 0.0
    %782 = vmatpush2.msra.mxu0 0.0
    %783 = vmatprep.subr.mxu0 0.0
    %784 = vmatpush2.msra.mxu0 0.0
    %785 = vmatprep.subr.mxu0 0.0
    %786 = vmatpush2.msra.mxu0 0.0
    %787 = vmatprep.subr.mxu0 0.0
    %788 = vmatpush2.msra.mxu0 0.0
    %789 = vmatprep.subr.mxu0 0.0
    %790 = vmatpush2.msra.mxu0 0.0
    %791 = vmatprep.subr.mxu0 0.0
    %792 = vmatpush2.msra.mxu0 0.0
    %793 = vmatprep.subr.mxu0 0.0
    %794 = vmatpush2.msra.mxu0 0.0
    %795 = vmatprep.subr.mxu0 0.0
    %796 = vmatpush2.msra.mxu0 0.0
    %797 = vmatprep.mubr.f32.mxu0 0.0
    %798 = vmatmul.mubr.f32.gmra.mxu0 %v728
    %v799 = vpop.f32.mrf.mxu0
    %v800 = vadd.f32 %v726, %v799
    %v801 = vpop.f32.mrf.mxu0
    %802 = vmatprep.mubr.f32.mxu0 0.0
    %803 = vmatmul.mubr.f32.gmra.mxu0 %v731
    %v804 = vpop.f32.mrf.mxu0
    %v805 = vadd.f32 %v726, %v804
    %v806 = vpop.f32.mrf.mxu0
    %807 = vdwg.mxu0
    %v808 = vmax.f32 %v800, 0.0
    %v809 = vmax.f32 %v805, 0.0
    %v810 = vlaneseq
    %v811 = vshrl.u32 %v810, 7
    %v812 = vsub.s32 1, %v811
    %v813 = vrot.slane %v62, %v812
    %vm814 = vcmask 523264
    %v816 = vsel %vm814, %v808, 0
    %v819 = vsel %vm814, %v809, 0
    %821 = vmatprep.subr.mxu0 0.0
    %822 = vmatpush1.msra.mxu0 0.0
    %823 = vmatprep.subr.mxu0 0.0
    %824 = vmatpush1.msra.mxu0 0.0
    %825 = vmatprep.subr.mxu0 0.0
    %826 = vmatpush1.msra.mxu0 0.0
    %827 = vmatprep.subr.mxu0 0.0
    %828 = vmatpush1.msra.mxu0 0.0
    %829 = vmatprep.subr.mxu0 0.0
    %830 = vmatpush1.msra.mxu0 0.0
    %831 = vmatprep.subr.mxu0 0.0
    %832 = vmatpush1.msra.mxu0 0.0
    %833 = vmatprep.subr.mxu0 0.0
    %834 = vmatpush1.msra.mxu0 0.0
    %835 = vmatprep.subr.mxu0 0.0
    %836 = vmatpush1.msra.mxu0 0.0
    %837 = vmatprep.subr.mxu0 0.0
    %838 = vmatpush1.msra.mxu0 %v61
    %839 = vmatprep.subr.mxu0 0.0
    %840 = vmatpush1.msra.mxu0 %v60
    %841 = vmatprep.subr.mxu0 0.0
    %842 = vmatpush1.msra.mxu0 %v59
    %843 = vmatprep.subr.mxu0 0.0
    %844 = vmatpush1.msra.mxu0 %v58
    %845 = vmatprep.subr.mxu0 0.0
    %846 = vmatpush1.msra.mxu0 %v57
    %847 = vmatprep.subr.mxu0 0.0
    %848 = vmatpush1.msra.mxu0 %v56
    %849 = vmatprep.subr.mxu0 0.0
    %850 = vmatpush1.msra.mxu0 %v55
    %851 = vmatprep.subr.mxu0 0.0
    %852 = vmatpush1.msra.mxu0 %v54
    %853 = vmatprep.subr.mxu0 0.0
    %854 = vmatpush2.msra.mxu0 0.0
    %855 = vmatprep.subr.mxu0 0.0
    %856 = vmatpush2.msra.mxu0 0.0
    %857 = vmatprep.subr.mxu0 0.0
    %858 = vmatpush2.msra.mxu0 0.0
    %859 = vmatprep.subr.mxu0 0.0
    %860 = vmatpush2.msra.mxu0 0.0
    %861 = vmatprep.subr.mxu0 0.0
    %862 = vmatpush2.msra.mxu0 0.0
    %863 = vmatprep.subr.mxu0 0.0
    %864 = vmatpush2.msra.mxu0 0.0
    %865 = vmatprep.subr.mxu0 0.0
    %866 = vmatpush2.msra.mxu0 0.0
    %867 = vmatprep.subr.mxu0 0.0
    %868 = vmatpush2.msra.mxu0 0.0
    %869 = vmatprep.subr.mxu0 0.0
    %870 = vmatpush2.msra.mxu0 0.0
    %871 = vmatprep.subr.mxu0 0.0
    %872 = vmatpush2.msra.mxu0 0.0
    %873 = vmatprep.subr.mxu0 0.0
    %874 = vmatpush2.msra.mxu0 0.0
    %875 = vmatprep.subr.mxu0 0.0
    %876 = vmatpush2.msra.mxu0 0.0
    %877 = vmatprep.subr.mxu0 0.0
    %878 = vmatpush2.msra.mxu0 0.0
    %879 = vmatprep.subr.mxu0 0.0
    %880 = vmatpush2.msra.mxu0 0.0
    %881 = vmatprep.subr.mxu0 0.0
    %882 = vmatpush2.msra.mxu0 0.0
    %883 = vmatprep.subr.mxu0 0.0
    %884 = vmatpush2.msra.mxu0 0.0
    %885 = vmatprep.mubr.f32.mxu0 0.0
    %886 = vmatmul.mubr.f32.gmra.mxu0 %v816
    %v887 = vpop.f32.mrf.mxu0
    %v888 = vadd.f32 %v813, %v887
    %v889 = vpop.f32.mrf.mxu0
    %890 = vmatprep.mubr.f32.mxu0 0.0
    %891 = vmatmul.mubr.f32.gmra.mxu0 %v819
    %v892 = vpop.f32.mrf.mxu0
    %v893 = vadd.f32 %v813, %v892
    %v894 = vpop.f32.mrf.mxu0
    %895 = vdwg.mxu0
    %v896 = vadd.f32 %v721, %v888
    %v897 = vadd.f32 %v722, %v893
    %v898 = vsel %vm63, %v896, 0.0
    %899 = vadd.xlane.f32.xlu0 %v898
    %v900 = vpop.xlane.xlu0 %899
    %v901 = vsel %vm686, %v897, 0.0
    %902 = vadd.xlane.f32.xlu0 %v901
    %v903 = vpop.xlane.xlu0 %902
    %v904 = vmul.f32 %v900, %v690
    %v905 = vmul.f32 %v903, %v690
    %v906 = vsub.f32 %v896, %v904
    %v907 = vsub.f32 %v897, %v905
    %v908 = vmul.f32 %v906, %v906
    %v909 = vmul.f32 %v907, %v907
    %v910 = vsel %vm63, %v908, 0.0
    %911 = vadd.xlane.f32.xlu0 %v910
    %v912 = vpop.xlane.xlu0 %911
    %v913 = vsel %vm686, %v909, 0.0
    %914 = vadd.xlane.f32.xlu0 %v913
    %v915 = vpop.xlane.xlu0 %914
    %v916 = vmul.f32 %v912, %v690
    %v917 = vmul.f32 %v915, %v690
    %v918 = vadd.f32 %v916, 1e-05
    %v919 = vadd.f32 %v917, 1e-05
    %v920 = vrsqrt.pop %v918
    %v921 = vrsqrt.pop %v919
    %v922 = vmul.f32 %v906, %v920
    %v923 = vmul.f32 %v907, %v921
    %v924 = vlaneseq
    %v925 = vshrl.u32 %v924, 7
    %v926 = vsub.s32 4, %v925
    %v927 = vrot.slane %v62, %v926
    %v928 = vmul.f32 %v922, %v927
    %v929 = vmul.f32 %v923, %v927
    %v930 = vlaneseq
    %v931 = vshrl.u32 %v930, 7
    %v932 = vsub.s32 5, %v931
    %v933 = vrot.slane %v62, %v932
    %v934 = vadd.f32 %v928, %v933
    %v935 = vadd.f32 %v929, %v933
    %v937 = vrot.slane %v934, 2
    %v938 = vsel %vm63, %v934, 0
    %v940 = vsel %vm63, %v937, 0
    %942 = vmatprep.subr.mxu0 0.0
    %943 = vmatpush1.xpose.msra.mxu0 0.0
    %944 = vmatprep.subr.mxu0 0.0
    %945 = vmatpush1.xpose.msra.mxu0 0.0
    %946 = vmatprep.subr.mxu0 0.0
    %947 = vmatpush1.xpose.msra.mxu0 0.0
    %948 = vmatprep.subr.mxu0 0.0
    %949 = vmatpush1.xpose.msra.mxu0 0.0
    %950 = vmatprep.subr.mxu0 0.0
    %951 = vmatpush1.xpose.msra.mxu0 0.0
    %952 = vmatprep.subr.mxu0 0.0
    %953 = vmatpush1.xpose.msra.mxu0 0.0
    %954 = vmatprep.subr.mxu0 0.0
    %955 = vmatpush1.xpose.msra.mxu0 0.0
    %956 = vmatprep.subr.mxu0 0.0
    %957 = vmatpush1.xpose.msra.mxu0 0.0
    %958 = vmatprep.subr.mxu0 0.0
    %959 = vmatpush1.xpose.msra.mxu0 0.0
    %960 = vmatprep.subr.mxu0 0.0
    %961 = vmatpush1.xpose.msra.mxu0 0.0
    %962 = vmatprep.subr.mxu0 0.0
    %963 = vmatpush1.xpose.msra.mxu0 0.0
    %964 = vmatprep.subr.mxu0 0.0
    %965 = vmatpush1.xpose.msra.mxu0 0.0
    %966 = vmatprep.subr.mxu0 0.0
    %967 = vmatpush1.xpose.msra.mxu0 0.0
    %968 = vmatprep.subr.mxu0 0.0
    %969 = vmatpush1.xpose.msra.mxu0 0.0
    %970 = vmatprep.subr.mxu0 0.0
    %971 = vmatpush1.xpose.msra.mxu0 0.0
    %972 = vmatprep.subr.mxu0 0.0
    %973 = vmatpush1.xpose.msra.mxu0 %v940
    %974 = vmatprep.subr.mxu0 0.0
    %975 = vmatpush2.xpose.msra.mxu0 0.0
    %976 = vmatprep.subr.mxu0 0.0
    %977 = vmatpush2.xpose.msra.mxu0 0.0
    %978 = vmatprep.subr.mxu0 0.0
    %979 = vmatpush2.xpose.msra.mxu0 0.0
    %980 = vmatprep.subr.mxu0 0.0
    %981 = vmatpush2.xpose.msra.mxu0 0.0
    %982 = vmatprep.subr.mxu0 0.0
    %983 = vmatpush2.xpose.msra.mxu0 0.0
    %984 = vmatprep.subr.mxu0 0.0
    %985 = vmatpush2.xpose.msra.mxu0 0.0
    %986 = vmatprep.subr.mxu0 0.0
    %987 = vmatpush2.xpose.msra.mxu0 0.0
    %988 = vmatprep.subr.mxu0 0.0
    %989 = vmatpush2.xpose.msra.mxu0 0.0
    %990 = vmatprep.subr.mxu0 0.0
    %991 = vmatpush2.xpose.msra.mxu0 0.0
    %992 = vmatprep.subr.mxu0 0.0
    %993 = vmatpush2.xpose.msra.mxu0 0.0
    %994 = vmatprep.subr.mxu0 0.0
    %995 = vmatpush2.xpose.msra.mxu0 0.0
    %996 = vmatprep.subr.mxu0 0.0
    %997 = vmatpush2.xpose.msra.mxu0 0.0
    %998 = vmatprep.subr.mxu0 0.0
    %999 = vmatpush2.xpose.msra.mxu0 0.0
    %1000 = vmatprep.subr.mxu0 0.0
    %1001 = vmatpush2.xpose.msra.mxu0 0.0
    %1002 = vmatprep.subr.mxu0 0.0
    %1003 = vmatpush2.xpose.msra.mxu0 0.0
    %1004 = vmatprep.subr.mxu0 0.0
    %1005 = vmatpush2.xpose.msra.mxu0 0.0
    %1006 = vmatprep.mubr.f32.mxu0 0.0
    %1007 = vmatmul.mubr.f32.gmra.mxu0 %v938
    %v1008 = vpop.f32.mrf.mxu0
    %v1009 = vadd.f32 0.0, %v1008
    %v1010 = vpop.f32.mrf.mxu0
    %1011 = vdwg.mxu0
    %v1012 = vrot.slane %v934, 1
    %vm1014 = vcmask 1040384
    %v1015 = vrot.slane %v934, 7
    %v1016 = vrot.slane %v935, 7
    %v1017 = vsel %vm1014, %v1015, %v1016
    %v1018 = vsel %vm63, %v1012, 0
    %v1020 = vsel %vm63, %v1017, 0
    %1022 = vmatprep.subr.mxu0 0.0
    %1023 = vmatpush1.xpose.msra.mxu0 0.0
    %1024 = vmatprep.subr.mxu0 0.0
    %1025 = vmatpush1.xpose.msra.mxu0 0.0
    %1026 = vmatprep.subr.mxu0 0.0
    %1027 = vmatpush1.xpose.msra.mxu0 0.0
    %1028 = vmatprep.subr.mxu0 0.0
    %1029 = vmatpush1.xpose.msra.mxu0 0.0
    %1030 = vmatprep.subr.mxu0 0.0
    %1031 = vmatpush1.xpose.msra.mxu0 0.0
    %1032 = vmatprep.subr.mxu0 0.0
    %1033 = vmatpush1.xpose.msra.mxu0 0.0
    %1034 = vmatprep.subr.mxu0 0.0
    %1035 = vmatpush1.xpose.msra.mxu0 0.0
    %1036 = vmatprep.subr.mxu0 0.0
    %1037 = vmatpush1.xpose.msra.mxu0 0.0
    %1038 = vmatprep.subr.mxu0 0.0
    %1039 = vmatpush1.xpose.msra.mxu0 0.0
    %1040 = vmatprep.subr.mxu0 0.0
    %1041 = vmatpush1.xpose.msra.mxu0 0.0
    %1042 = vmatprep.subr.mxu0 0.0
    %1043 = vmatpush1.xpose.msra.mxu0 0.0
    %1044 = vmatprep.subr.mxu0 0.0
    %1045 = vmatpush1.xpose.msra.mxu0 0.0
    %1046 = vmatprep.subr.mxu0 0.0
    %1047 = vmatpush1.xpose.msra.mxu0 0.0
    %1048 = vmatprep.subr.mxu0 0.0
    %1049 = vmatpush1.xpose.msra.mxu0 0.0
    %1050 = vmatprep.subr.mxu0 0.0
    %1051 = vmatpush1.xpose.msra.mxu0 0.0
    %1052 = vmatprep.subr.mxu0 0.0
    %1053 = vmatpush1.xpose.msra.mxu0 %v1020
    %1054 = vmatprep.subr.mxu0 0.0
    %1055 = vmatpush2.xpose.msra.mxu0 0.0
    %1056 = vmatprep.subr.mxu0 0.0
    %1057 = vmatpush2.xpose.msra.mxu0 0.0
    %1058 = vmatprep.subr.mxu0 0.0
    %1059 = vmatpush2.xpose.msra.mxu0 0.0
    %1060 = vmatprep.subr.mxu0 0.0
    %1061 = vmatpush2.xpose.msra.mxu0 0.0
    %1062 = vmatprep.subr.mxu0 0.0
    %1063 = vmatpush2.xpose.msra.mxu0 0.0
    %1064 = vmatprep.subr.mxu0 0.0
    %1065 = vmatpush2.xpose.msra.mxu0 0.0
    %1066 = vmatprep.subr.mxu0 0.0
    %1067 = vmatpush2.xpose.msra.mxu0 0.0
    %1068 = vmatprep.subr.mxu0 0.0
    %1069 = vmatpush2.xpose.msra.mxu0 0.0
    %1070 = vmatprep.subr.mxu0 0.0
    %1071 = vmatpush2.xpose.msra.mxu0 0.0
    %1072 = vmatprep.subr.mxu0 0.0
    %1073 = vmatpush2.xpose.msra.mxu0 0.0
    %1074 = vmatprep.subr.mxu0 0.0
    %1075 = vmatpush2.xpose.msra.mxu0 0.0
    %1076 = vmatprep.subr.mxu0 0.0
    %1077 = vmatpush2.xpose.msra.mxu0 0.0
    %1078 = vmatprep.subr.mxu0 0.0
    %1079 = vmatpush2.xpose.msra.mxu0 0.0
    %1080 = vmatprep.subr.mxu0 0.0
    %1081 = vmatpush2.xpose.msra.mxu0 0.0
    %1082 = vmatprep.subr.mxu0 0.0
    %1083 = vmatpush2.xpose.msra.mxu0 0.0
    %1084 = vmatprep.subr.mxu0 0.0
    %1085 = vmatpush2.xpose.msra.mxu0 0.0
    %1086 = vmatprep.mubr.f32.mxu0 0.0
    %1087 = vmatmul.mubr.f32.gmra.mxu0 %v1018
    %v1088 = vpop.f32.mrf.mxu0
    %v1089 = vadd.f32 0.0, %v1088
    %v1090 = vpop.f32.mrf.mxu0
    %1091 = vdwg.mxu0
    %v1093 = vrot.slane %v1089, 7
    %v1095 = vsel %vm1014, %v1009, %v1093
    %vm1096 = vcmask 33792
    %1097 = vst.msk [vmem:[#allocation2] sm:$0x3] %vm1096, %v1095
    %v1098 = vld [vmem:[%s6] sm:$0x3]
    %v1099 = vsel %vm1096, %v1095, -inf
    %1100 = vmax.xlane.f32.xlu0 %v1099
    %v1101 = vpop.xlane.xlu0 %1100
    %v1102 = vsub.f32 %v1095, %v1101
    %v1103 = vmul.f32 %v1102, 1.442695
    %v1104 = vpow.pop %v1103
    %v1105 = vsel %vm1096, %v1104, 0.0
    %1106 = vadd.xlane.f32.xlu0 %v1105
    %v1107 = vpop.xlane.xlu0 %1106
    %v1108 = vlog2.pop %v1107
    %v1109 = vmul.f32 %v1108, 0.6931472
    %v1110 = vadd.f32 %v1101, %v1109
    %v1111 = vlaneseq
    %v1112 = vand.u32 %v1111, 127
    %1113 = vset.pattern.permute.xlu0 0
    %1114 = vperm.xlu0 %1113, %v1098
    %v1115 = vpop.permute.xlu0 %1114
    %vm1116 = vcmp.eq.s32.totalorder %v1112, %v1115
    %v1117 = vsel %vm1116, %v1095, 0.0
    %v1118 = vsel %vm1096, %v1117, 0.0
    %1119 = vadd.xlane.f32.xlu0 %v1118
    %v1120 = vpop.xlane.xlu0 %1119
    %v1121 = vsub.f32 %v1110, %v1120
    %vm1122 = vcmask 1041408
    %v1123 = vsel %vm1122, %v1121, 0.0
    %v1124 = vrot.slane %v1123, 4
    %v1125 = vadd.f32 %v1123, %v1124
    %v1126 = vrot.slane %v1125, 2
    %v1127 = vadd.f32 %v1125, %v1126
    %v1128 = vrot.slane %v1127, 1
    %v1129 = vadd.f32 %v1127, %v1128
    %v1130 = vrcp.pop 2.0
    %v1131 = vmul.f32 %v1129, %v1130
    %vm1132 = vcmask 0
    %1133 = vst.msk [vmem:[#allocation4] sm:$0x1] %vm1132, %v1131
    // Predicated region
    $region30: #{wsd_forward.1} parent=1 // pred_check
      _
    $region31: #{wsd_forward.1} parent=1 // pred_check_branch
      %1135 = sbr.rel (0) target = $region33
    $region32: #{wsd_forward.1} parent=1 // pred_region
      %s1137 = ssub.s32 32, 32
      %1138 = vsyncadd [#allocation3], %s1137
      %s1140 = sshll.u32 [#allocation2], 4
      %s1141 = int_to_ptr.vmem [resolvable:$true] %s1140
      %1143 = dma.vmem_to_hbm [thread:$0]  %s1141, 32, %s7, [#allocation3]
    $region33: #{wsd_forward.1} parent=1 // pred_fallthru
      _
    // Predicated region
    $region34: #{wsd_forward.1} parent=1 // pred_check
      _
    $region35: #{wsd_forward.1} parent=1 // pred_check_branch
      %1145 = sbr.rel (0) target = $region37
    $region36: #{wsd_forward.1} parent=1 // pred_region
      %s1147 = ssub.s32 16, 16
      %1148 = vsyncadd [#allocation5], %s1147
      %s1150 = sshll.u32 [#allocation4], 4
      %s1151 = int_to_ptr.vmem [resolvable:$true] %s1150
      %1153 = dma.vmem_to_hbm [thread:$0]  %s1151, 16, %s8, [#allocation5]
    $region37: #{wsd_forward.1} parent=1 // pred_fallthru
      _
    // Predicated region
    $region38: #{wsd_forward.1} parent=1 // pred_check
      _
    $region39: #{wsd_forward.1} parent=1 // pred_check_branch
      %1155 = sbr.rel (0) target = $region41
    $region40: #{wsd_forward.1} parent=1 // pred_region
      %1156 = dma.done [#allocation3], 32
    $region41: #{wsd_forward.1} parent=1 // pred_fallthru
      _
    // Predicated region
    $region42: #{wsd_forward.1} parent=1 // pred_check
      _
    $region43: #{wsd_forward.1} parent=1 // pred_check_branch
      %1158 = sbr.rel (0) target = $region45
    $region44: #{wsd_forward.1} parent=1 // pred_region
      %1159 = dma.done [#allocation5], 16
    $region45: #{wsd_forward.1} parent=1 // pred_fallthru
      _
    %1160 = vsyncpa [#allocation3], 1
    %1161 = vsyncpa [#allocation5], 1

</llo_original>
